<compile_context>
chip_gen: v7x
topology: tpu7x:2x2x1
jax: 0.10.0
libtpu: 0.0.40
codegen_flags: <defaults>
</compile_context>

<pallas_src>
import functools

import jax
import jax.numpy as jnp
from jax import lax
from jax.experimental import pallas as pl
from jax.experimental.pallas import tpu as pltpu


def _flash_attn_kernel(key_channels, value_channels,
                       x_q_ref, x_k_ref, wkv_ref, bkv_ref, wf_ref, bf_ref,
                       o_ref,
                       q_sc, m_sc, acc_sc):
    """One (batch, query-tile) output block; grid axis 2 streams key/value blocks."""
    Kc, Vc = key_channels, value_channels
    ki = pl.program_id(2)

    # ---- init (first key block): project the query tile once, reset online-softmax state.
    @pl.when(ki == 0)
    def _():
        qp = jnp.dot(wkv_ref[...], x_q_ref[...],
                     preferred_element_type=jnp.float32) + bkv_ref[...]
        # f_query == f_key; Kc**-0.25 is pre-folded into wkv/bkv (ReLU commutes with the
        # positive scale), so q.k carries the module's Kc**-0.5 overall scale.
        q_sc[...] = jnp.maximum(qp[:Kc, :], 0.0).astype(jnp.bfloat16)      # (Kc, Tq)
        m_sc[...] = jnp.full_like(m_sc, -jnp.inf)
        acc_sc[...] = jnp.zeros_like(acc_sc)

    # ---- fused key/value projection of this key block (f_key BN pre-folded).
    # Row Kc+Vc of wkv is all-zero with bias 1.0 -> the last row of kvb is exactly 1, so
    # the softmax denominator rides the PV matmul below (no cross-lane row-sum needed).
    kvb = jnp.dot(wkv_ref[...], x_k_ref[...],
                  preferred_element_type=jnp.float32) + bkv_ref[...]       # (Kc+Vc+1, Tk)
    k = jnp.maximum(kvb[:Kc, :], 0.0).astype(jnp.bfloat16)                 # (Kc, Tk)
    v_ext = kvb[Kc:, :].astype(jnp.bfloat16)                               # (Vc+1, Tk)

    # sim[q,k] = sum_c q[c,q] * k[c,k]   (bf16 operands, f32 accumulation on the MXU)
    s = lax.dot_general(q_sc[...], k, (((0,), (0,)), ((), ())),
                        preferred_element_type=jnp.float32)                # (Tq, Tk)

    # ---- online softmax; normalization deferred to after the PV matmul.
    m_prev = m_sc[...]
    m_new = jnp.maximum(m_prev, jnp.max(s, axis=-1, keepdims=True))        # (Tq, 1)
    alpha = jnp.exp(m_prev - m_new)
    p = jnp.exp(s - m_new).astype(jnp.bfloat16)                            # (Tq, Tk)

    # pv[q, v] = sum_k p[q,k] * v_ext[v,k]; column Vc accumulates sum_k p[q,k].
    pv = lax.dot_general(p, v_ext, (((1,), (1,)), ((), ())),
                         preferred_element_type=jnp.float32)               # (Tq, Vc+1)
    acc_sc[...] = alpha * acc_sc[...] + pv
    m_sc[...] = m_new

    # ---- finalize (last key block): normalize the small (Tq, Vc) context, then the
    # composed (W conv)->(out conv)->(out BN) affine and ReLU; lane-dense (Cout, Tq) store.
    @pl.when(ki == pl.num_programs(2) - 1)
    def _():
        acc = acc_sc[...]
        inv = pl.reciprocal(acc[:, Vc:Vc + 1], approx=True)                # (Tq, 1)
        ctx = (acc[:, :Vc] * inv).astype(jnp.bfloat16)                     # (Tq, Vc)
        out = lax.dot_general(wf_ref[...], ctx, (((1,), (1,)), ((), ())),
                              preferred_element_type=jnp.float32) + bf_ref[...]
        o_ref[...] = jnp.maximum(out, 0.0).astype(o_ref.dtype)


def _pick_tile(hw, cap):
    """Largest multiple of 128 that divides hw and is <= cap; else the full extent."""
    if hw <= cap:
        return hw
    t = (cap // 128) * 128
    while t >= 128:
        if hw % t == 0:
            return t
        t -= 128
    return hw


def _vmem_bytes_estimate(Cin, Cout, Kc, Vc, Tq, Tk):
    """Rough per-core VMEM footprint: double-buffered streamed blocks + weights +
    scratch + the large in-kernel temporaries (sim/p and the projected kv block)."""
    C = Kc + Vc + 1
    stream = 2 * (Cin * Tq * 2 + Cin * Tk * 2 + Cout * Tq * 4)
    weights = 2 * (C * Cin * 2 + C * 4 + Cout * Vc * 2 + Cout * 4)
    scratch = Kc * Tq * 2 + Tq * 4 + Tq * (Vc + 1) * 4
    temps = Tq * Tk * (4 + 2) + C * Tk * 4 + C * Tq * 4 + Cout * Tq * 4
    return stream + weights + scratch + temps


def self_attention_block(x_nchw, params, eps=1e-5, tq=256, tk=512):
    """x_nchw: (B, Cin, H, W) float32. Returns (B, Cout, H, W) float32.

    Default tiles (tq=256, tk=512) are sized for v7x's 64 MiB VMEM; pass smaller tiles
    to exercise the flash loop at small spatial sizes.
    """
    B, Cin, H, W = x_nchw.shape
    HW = H * W
    Kc = params['w_key'].shape[0]
    Vc = params['w_value'].shape[0]
    Cout = params['w_out'].shape[0]
    # Module's own shape constraints: norm_layer(out_channels) inside f_key, and
    # conv_bn_dropout (in_channels -> out_channels) consuming the W(context) output.
    assert Kc == Cout, "f_key BN is sized with out_channels (module requires Kc == Cout)"
    assert params['w_out'].shape[1] == Cin and params['w_W'].shape[0] == Cin, \
        "conv_bn_dropout consumes an in_channels-wide context (module requires Cin == Cout)"
    # (Kc a multiple of 8 keeps the kvb[:Kc]/kvb[Kc:] sublane split relayout-free.)

    f32, bf16 = jnp.float32, jnp.bfloat16
    Tq = _pick_tile(HW, tq)
    Tk = _pick_tile(HW, tk)
    nqb, nkb = HW // Tq, HW // Tk

    # Channel-major (C, HW) layout (pure reshape, no transpose); bf16 halves the DMA
    # bytes of the only per-step streamed tensor.
    x = x_nchw.reshape(B, Cin, HW).astype(bf16)

    def bn_scale_shift(g, b, m, v):
        s = g.astype(f32) / jnp.sqrt(v.astype(f32) + eps)
        return s, b.astype(f32) - m.astype(f32) * s

    # f_key's eval-BN folded into the key conv; Kc**-0.25 folded on top (valid because
    # the scale is positive, so it commutes with ReLU; both softmax operands carry it).
    sk, shk = bn_scale_shift(params['bn_key_gamma'], params['bn_key_beta'],
                             params['bn_key_mean'], params['bn_key_var'])
    qscale = float(Kc) ** -0.25
    wk = params['w_key'].astype(f32) * (sk * qscale)[:, None]              # (Kc, Cin)
    bk = (params['b_key'].astype(f32) * sk + shk) * qscale                 # (Kc,)

    # Fused projection: [scaled key rows ; value rows ; all-zero row with bias 1.0]
    # (the extra row makes the softmax denominator fall out of the PV matmul).
    w_kv = jnp.concatenate([wk, params['w_value'].astype(f32),
                            jnp.zeros((1, Cin), f32)], axis=0)             # (Kc+Vc+1, Cin)
    b_kv = jnp.concatenate([bk, params['b_value'].astype(f32),
                            jnp.ones((1,), f32)], axis=0)[:, None]         # (Kc+Vc+1, 1)

    # Compose (W conv) -> (out conv) -> (out BN) into a single (Cout, Vc) affine map.
    so, to = bn_scale_shift(params['bn_out_gamma'], params['bn_out_beta'],
                            params['bn_out_mean'], params['bn_out_var'])
    ww, bw = params['w_W'].astype(f32), params['b_W'].astype(f32)          # (Cin, Vc), (Cin,)
    wo, bo = params['w_out'].astype(f32), params['b_out'].astype(f32)      # (Cout, Cin), (Cout,)
    w_f = so[:, None] * (wo @ ww)                                          # (Cout, Vc)
    b_f = (so * (wo @ bw + bo) + to)[:, None]                              # (Cout, 1)

    w_kv_b = w_kv.astype(bf16)
    w_f_b = w_f.astype(bf16)

    def const_spec(a):  # weights/biases resident across the whole grid
        return pl.BlockSpec(a.shape, lambda b, qi, ki, _n=a.ndim: (0,) * _n)

    grid_spec = pltpu.PrefetchScalarGridSpec(
        num_scalar_prefetch=0,
        grid=(B, nqb, nkb),
        in_specs=[
            pl.BlockSpec((pl.Squeezed(), Cin, Tq), lambda b, qi, ki: (b, 0, qi)),  # query tile
            pl.BlockSpec((pl.Squeezed(), Cin, Tk), lambda b, qi, ki: (b, 0, ki)),  # key/val block
            const_spec(w_kv_b), const_spec(b_kv),
            const_spec(w_f_b), const_spec(b_f),
        ],
        out_specs=pl.BlockSpec((pl.Squeezed(), Cout, Tq), lambda b, qi, ki: (b, 0, qi)),
        scratch_shapes=[
            pltpu.VMEM((Kc, Tq), bf16),       # projected query tile (cached across key blocks)
            pltpu.VMEM((Tq, 1), f32),         # online-softmax running max
            pltpu.VMEM((Tq, Vc + 1), f32),    # unnormalized context + denominator column
        ],
    )

    # Explicit VMEM budget derived from the chosen tiles (with 2x headroom).
    vmem_limit = int(min(max(2 * _vmem_bytes_estimate(Cin, Cout, Kc, Vc, Tq, Tk),
                             16 * 1024 * 1024), 64 * 1024 * 1024))

    out = pl.pallas_call(
        functools.partial(_flash_attn_kernel, Kc, Vc),
        out_shape=jax.ShapeDtypeStruct((B, Cout, HW), f32),
        grid_spec=grid_spec,
        compiler_params=pltpu.CompilerParams(
            dimension_semantics=("parallel", "parallel", "arbitrary"),
            vmem_limit_bytes=vmem_limit),
    )(x, x, w_kv_b, b_kv, w_f_b, b_f)

    # (B, Cout, HW) -> NCHW; pure reshape, no transpose.
    return out.reshape(B, Cout, H, W)


def ref_forward(x, p, eps=1e-5):
    """Pure-JAX NCHW reference following the PyTorch forward (scale=1, eval BN)."""
    B, C, H, W = x.shape
    Kc = p['w_key'].shape[0]

    def conv1x1(t, w, b):
        return jnp.einsum('nchw,oc->nohw', t, w) + b[None, :, None, None]

    def bn(t, g, bb, m, v):
        return (g[None, :, None, None] * (t - m[None, :, None, None])
                / jnp.sqrt(v[None, :, None, None] + eps) + bb[None, :, None, None])

    fk = jax.nn.relu(bn(conv1x1(x, p['w_key'], p['b_key']),
                        p['bn_key_gamma'], p['bn_key_beta'],
                        p['bn_key_mean'], p['bn_key_var']))
    value = conv1x1(x, p['w_value'], p['b_value']).reshape(B, -1, H * W).transpose(0, 2, 1)
    query = fk.reshape(B, -1, H * W).transpose(0, 2, 1)
    key = fk.reshape(B, -1, H * W)
    sim = jnp.einsum('bqc,bck->bqk', query, key) * (Kc ** -0.5)
    sim = jax.nn.softmax(sim, axis=-1)
    context = jnp.einsum('bqk,bkv->bqv', sim, value).transpose(0, 2, 1).reshape(B, -1, H, W)
    context = conv1x1(context, p['w_W'], p['b_W'])
    out = jax.nn.relu(bn(conv1x1(context, p['w_out'], p['b_out']),
                         p['bn_out_gamma'], p['bn_out_beta'],
                         p['bn_out_mean'], p['bn_out_var']))
    return out


def make_params(key, Cin, Kc, Vc, Cout):
    ks = jax.random.split(key, 14)
    f32 = jnp.float32
    return {
        'w_key': (0.1 * jax.random.normal(ks[0], (Kc, Cin))).astype(f32),
        'b_key': (0.1 * jax.random.normal(ks[1], (Kc,))).astype(f32),
        # NOTE: module passes norm_layer(out_channels) here (works since Kc == Cout).
        'bn_key_gamma': (1.0 + 0.1 * jax.random.normal(ks[2], (Cout,))).astype(f32),
        'bn_key_beta': (0.1 * jax.random.normal(ks[3], (Cout,))).astype(f32),
        'bn_key_mean': (0.1 * jax.random.normal(ks[4], (Cout,))).astype(f32),
        'bn_key_var': (0.5 + jnp.abs(jax.random.normal(ks[5], (Cout,)))).astype(f32),
        'w_value': (0.1 * jax.random.normal(ks[6], (Vc, Cin))).astype(f32),
        'b_value': (0.1 * jax.random.normal(ks[7], (Vc,))).astype(f32),
        'w_W': jnp.zeros((Cout, Vc), f32),      # nn.init.constant(W.weight, 0)
        'b_W': jnp.zeros((Cout,), f32),         # nn.init.constant(W.bias, 0)
        'w_out': (0.1 * jax.random.normal(ks[8], (Cout, Cin))).astype(f32),
        'b_out': (0.1 * jax.random.normal(ks[9], (Cout,))).astype(f32),
        'bn_out_gamma': (1.0 + 0.1 * jax.random.normal(ks[10], (Cout,))).astype(f32),
        'bn_out_beta': (0.1 * jax.random.normal(ks[11], (Cout,))).astype(f32),
        'bn_out_mean': (0.1 * jax.random.normal(ks[12], (Cout,))).astype(f32),
        'bn_out_var': (0.5 + jnp.abs(jax.random.normal(ks[13], (Cout,)))).astype(f32),
    }


if __name__ == "__main__":
    # in_channels = key_channels = out_channels (the module's own shape constraints).
    B, Cin, H, W = 2, 8, 16, 16
    Kc, Vc, Cout = 8, 8, 8

    root = jax.random.PRNGKey(0)
    k_x, k_p, k_w = jax.random.split(root, 3)
    x = jax.random.normal(k_x, (B, Cin, H, W), dtype=jnp.float32)

    # Tiles chosen so HW=256 splits into 2 query tiles x 2 key blocks -> the flash
    # (online-softmax) loop and the query-tile grid axis are both exercised.
    run = functools.partial(self_attention_block, tq=128, tk=128)

    # 1) Faithful parameters (W conv zero-initialized, exactly as the module). With
    #    W == 0 the output is independent of the attention path (and of the bf16 cast
    #    of x), so this check stays tight.
    params = make_params(k_p, Cin, Kc, Vc, Cout)
    out = jax.block_until_ready(run(x, params))
    ref = ref_forward(x, params)
    assert out.shape == (B, Cout, H, W)
    assert jnp.allclose(out, ref, atol=1e-4, rtol=1e-4), "mismatch (zero-W run)"

    # 2) Extra validation with non-zero W so the flash-attention path is exercised
    #    end-to-end. Looser tolerance: bf16 activations/weights (f32 accumulation) and
    #    the approximate EUP reciprocal on the softmax denominator.
    params_nz = dict(params)
    kw1, kw2 = jax.random.split(k_w)
    params_nz['w_W'] = (0.1 * jax.random.normal(kw1, (Cout, Vc))).astype(jnp.float32)
    params_nz['b_W'] = (0.1 * jax.random.normal(kw2, (Cout,))).astype(jnp.float32)
    out_nz = jax.block_until_ready(run(x, params_nz))
    ref_nz = ref_forward(x, params_nz)
    assert jnp.allclose(out_nz, ref_nz, atol=2e-2, rtol=2e-2), "mismatch (nonzero-W run)"

    print("KERNEL_OK")
</pallas_src>

<mosaic_0001>
module attributes {stable_mosaic.version = 11 : i64} {
  func.func @_flash_attn_kernel(%arg0: i32, %arg1: i32, %arg2: i32, %arg3: memref<1x8x128xbf16, #tpu.memory_space<vmem>>, %arg4: memref<1x8x128xbf16, #tpu.memory_space<vmem>>, %arg5: memref<17x8xbf16, #tpu.memory_space<vmem>>, %arg6: memref<17x1xf32, #tpu.memory_space<vmem>>, %arg7: memref<8x8xbf16, #tpu.memory_space<vmem>>, %arg8: memref<8x1xf32, #tpu.memory_space<vmem>>, %arg9: memref<1x8x128xf32, #tpu.memory_space<vmem>>, %arg10: memref<8x128xbf16, #tpu.memory_space<vmem>>, %arg11: memref<128x1xf32, #tpu.memory_space<vmem>>, %arg12: memref<128x9xf32, #tpu.memory_space<vmem>>) attributes {dimension_semantics = [#tpu.dimension_semantics<parallel>, #tpu.dimension_semantics<parallel>, #tpu.dimension_semantics<arbitrary>], iteration_bounds = array<i64: 2, 2, 2>, scalar_prefetch = 0 : i64, scratch_operands = 3 : i64, tpu.core_type = #tpu.core_type<tc>, window_params = [{transform_indices = @transform_0, window_bounds = array<i64: 1, 8, 128>}, {transform_indices = @transform_1, window_bounds = array<i64: 1, 8, 128>}, {pipeline_mode = #tpu.pipeline_mode<synchronous>, transform_indices = @transform_2, window_bounds = array<i64: 17, 8>}, {pipeline_mode = #tpu.pipeline_mode<synchronous>, transform_indices = @transform_3, window_bounds = array<i64: 17, 1>}, {pipeline_mode = #tpu.pipeline_mode<synchronous>, transform_indices = @transform_4, window_bounds = array<i64: 8, 8>}, {pipeline_mode = #tpu.pipeline_mode<synchronous>, transform_indices = @transform_5, window_bounds = array<i64: 8, 1>}, {transform_indices = @transform_6, window_bounds = array<i64: 1, 8, 128>}]} {
    %c0_i32 = arith.constant 0 : i32
    %0 = arith.cmpi eq, %arg2, %c0_i32 : i32
    %1 = arith.extui %0 : i1 to i32
    %c0_i32_0 = arith.constant 0 : i32
    %2 = arith.cmpi ne, %1, %c0_i32_0 : i32
    scf.if %2 {
      %c0_22 = arith.constant 0 : index
      %c0_23 = arith.constant 0 : index
      %38 = vector.load %arg5[%c0_22, %c0_23] : memref<17x8xbf16, #tpu.memory_space<vmem>>, vector<17x8xbf16>
      %c0_24 = arith.constant 0 : index
      %c0_25 = arith.constant 0 : index
      %c0_26 = arith.constant 0 : index
      %39 = vector.load %arg3[%c0_24, %c0_25, %c0_26] : memref<1x8x128xbf16, #tpu.memory_space<vmem>>, vector<1x8x128xbf16>
      %40 = vector.shape_cast %39 : vector<1x8x128xbf16> to vector<8x128xbf16>
      %cst_27 = arith.constant dense<0.000000e+00> : vector<17x128xf32>
      %41 = tpu.matmul %38, %40, %cst_27 {dimension_numbers = #tpu.dot_dimension_numbers<[1], [0], [0], [1], [0, 0, 1, 1], [], []>} : vector<17x8xbf16>, vector<8x128xbf16>, vector<17x128xf32> -> vector<17x128xf32>
      %c0_28 = arith.constant 0 : index
      %c0_29 = arith.constant 0 : index
      %42 = vector.load %arg6[%c0_28, %c0_29] : memref<17x1xf32, #tpu.memory_space<vmem>>, vector<17x1xf32>
      %43 = vector.broadcast %42 : vector<17x1xf32> to vector<17x128xf32>
      %44 = arith.addf %41, %43 : vector<17x128xf32>
      %45 = vector.extract_strided_slice %44 {offsets = [0, 0], sizes = [8, 128], strides = [1, 1]} : vector<17x128xf32> to vector<8x128xf32>
      %cst_30 = arith.constant 0.000000e+00 : f32
      %46 = vector.broadcast %cst_30 : f32 to vector<8x128xf32>
      %47 = arith.maximumf %45, %46 : vector<8x128xf32>
      %48 = arith.truncf %47 : vector<8x128xf32> to vector<8x128xbf16>
      %c0_31 = arith.constant 0 : index
      %c0_32 = arith.constant 0 : index
      %49 = vector.load %arg10[%c0_31, %c0_32] : memref<8x128xbf16, #tpu.memory_space<vmem>>, vector<8x128xbf16>
      tpu.vector_store %arg10[%c0_31, %c0_32], %48 {strides = array<i32>} : memref<8x128xbf16, #tpu.memory_space<vmem>>, vector<8x128xbf16>,
      %cst_33 = arith.constant 0xFF800000 : f32
      %50 = vector.broadcast %cst_33 : f32 to vector<128x1xf32>
      %c0_34 = arith.constant 0 : index
      %c0_35 = arith.constant 0 : index
      %51 = vector.load %arg11[%c0_34, %c0_35] : memref<128x1xf32, #tpu.memory_space<vmem>>, vector<128x1xf32>
      tpu.vector_store %arg11[%c0_34, %c0_35], %50 {strides = array<i32>} : memref<128x1xf32, #tpu.memory_space<vmem>>, vector<128x1xf32>,
      %cst_36 = arith.constant 0.000000e+00 : f32
      %52 = vector.broadcast %cst_36 : f32 to vector<128x9xf32>
      %c0_37 = arith.constant 0 : index
      %c0_38 = arith.constant 0 : index
      %53 = vector.load %arg12[%c0_37, %c0_38] : memref<128x9xf32, #tpu.memory_space<vmem>>, vector<128x9xf32>
      tpu.vector_store %arg12[%c0_37, %c0_38], %52 {strides = array<i32>} : memref<128x9xf32, #tpu.memory_space<vmem>>, vector<128x9xf32>,
    } else {
    }
    %c0 = arith.constant 0 : index
    %c0_1 = arith.constant 0 : index
    %3 = vector.load %arg5[%c0, %c0_1] : memref<17x8xbf16, #tpu.memory_space<vmem>>, vector<17x8xbf16>
    %c0_2 = arith.constant 0 : index
    %c0_3 = arith.constant 0 : index
    %c0_4 = arith.constant 0 : index
    %4 = vector.load %arg4[%c0_2, %c0_3, %c0_4] : memref<1x8x128xbf16, #tpu.memory_space<vmem>>, vector<1x8x128xbf16>
    %5 = vector.shape_cast %4 : vector<1x8x128xbf16> to vector<8x128xbf16>
    %cst = arith.constant dense<0.000000e+00> : vector<17x128xf32>
    %6 = tpu.matmul %3, %5, %cst {dimension_numbers = #tpu.dot_dimension_numbers<[1], [0], [0], [1], [0, 0, 1, 1], [], []>} : vector<17x8xbf16>, vector<8x128xbf16>, vector<17x128xf32> -> vector<17x128xf32>
    %c0_5 = arith.constant 0 : index
    %c0_6 = arith.constant 0 : index
    %7 = vector.load %arg6[%c0_5, %c0_6] : memref<17x1xf32, #tpu.memory_space<vmem>>, vector<17x1xf32>
    %8 = vector.broadcast %7 : vector<17x1xf32> to vector<17x128xf32>
    %9 = arith.addf %6, %8 : vector<17x128xf32>
    %10 = vector.extract_strided_slice %9 {offsets = [0, 0], sizes = [8, 128], strides = [1, 1]} : vector<17x128xf32> to vector<8x128xf32>
    %cst_7 = arith.constant 0.000000e+00 : f32
    %11 = vector.broadcast %cst_7 : f32 to vector<8x128xf32>
    %12 = arith.maximumf %10, %11 : vector<8x128xf32>
    %13 = arith.truncf %12 : vector<8x128xf32> to vector<8x128xbf16>
    %14 = vector.extract_strided_slice %9 {offsets = [8, 0], sizes = [9, 128], strides = [1, 1]} : vector<17x128xf32> to vector<9x128xf32>
    %15 = arith.truncf %14 : vector<9x128xf32> to vector<9x128xbf16>
    %c0_8 = arith.constant 0 : index
    %c0_9 = arith.constant 0 : index
    %16 = vector.load %arg10[%c0_8, %c0_9] : memref<8x128xbf16, #tpu.memory_space<vmem>>, vector<8x128xbf16>
    %cst_10 = arith.constant dense<0.000000e+00> : vector<128x128xf32>
    %17 = tpu.matmul %16, %13, %cst_10 {dimension_numbers = #tpu.dot_dimension_numbers<[0], [0], [1], [1], [0, 1, 1, 1], [], []>} : vector<8x128xbf16>, vector<8x128xbf16>, vector<128x128xf32> -> vector<128x128xf32>
    %c0_11 = arith.constant 0 : index
    %c0_12 = arith.constant 0 : index
    %18 = vector.load %arg11[%c0_11, %c0_12] : memref<128x1xf32, #tpu.memory_space<vmem>>, vector<128x1xf32>
    %cst_13 = arith.constant dense<0xFF800000> : vector<128xf32>
    %19 = vector.multi_reduction <maximumf>, %17, %cst_13 [1] : vector<128x128xf32> to vector<128xf32>
    %20 = vector.shape_cast %19 : vector<128xf32> to vector<128x1xf32>
    %21 = arith.maximumf %18, %20 : vector<128x1xf32>
    %22 = arith.subf %18, %21 : vector<128x1xf32>
    %23 = math.exp %22 : vector<128x1xf32>
    %24 = vector.broadcast %21 : vector<128x1xf32> to vector<128x128xf32>
    %25 = arith.subf %17, %24 : vector<128x128xf32>
    %26 = math.exp %25 : vector<128x128xf32>
    %27 = arith.truncf %26 : vector<128x128xf32> to vector<128x128xbf16>
    %cst_14 = arith.constant dense<0.000000e+00> : vector<128x9xf32>
    %28 = tpu.matmul %27, %15, %cst_14 {dimension_numbers = #tpu.dot_dimension_numbers<[1], [1], [0], [0], [0, 0, 1, 0], [], []>} : vector<128x128xbf16>, vector<9x128xbf16>, vector<128x9xf32> -> vector<128x9xf32>
    %c0_15 = arith.constant 0 : index
    %c0_16 = arith.constant 0 : index
    %29 = vector.load %arg12[%c0_15, %c0_16] : memref<128x9xf32, #tpu.memory_space<vmem>>, vector<128x9xf32>
    %30 = vector.broadcast %23 : vector<128x1xf32> to vector<128x9xf32>
    %31 = arith.mulf %30, %29 : vector<128x9xf32>
    %32 = arith.addf %31, %28 : vector<128x9xf32>
    %c0_17 = arith.constant 0 : index
    %c0_18 = arith.constant 0 : index
    %33 = vector.load %arg12[%c0_17, %c0_18] : memref<128x9xf32, #tpu.memory_space<vmem>>, vector<128x9xf32>
    tpu.vector_store %arg12[%c0_17, %c0_18], %32 {strides = array<i32>} : memref<128x9xf32, #tpu.memory_space<vmem>>, vector<128x9xf32>,
    %c0_19 = arith.constant 0 : index
    %c0_20 = arith.constant 0 : index
    %34 = vector.load %arg11[%c0_19, %c0_20] : memref<128x1xf32, #tpu.memory_space<vmem>>, vector<128x1xf32>
    tpu.vector_store %arg11[%c0_19, %c0_20], %21 {strides = array<i32>} : memref<128x1xf32, #tpu.memory_space<vmem>>, vector<128x1xf32>,
    %c1_i32 = arith.constant 1 : i32
    %35 = arith.cmpi eq, %arg2, %c1_i32 : i32
    %36 = arith.extui %35 : i1 to i32
    %c0_i32_21 = arith.constant 0 : i32
    %37 = arith.cmpi ne, %36, %c0_i32_21 : i32
    scf.if %37 {
      %c0_22 = arith.constant 0 : index
      %c0_23 = arith.constant 0 : index
      %38 = vector.load %arg12[%c0_22, %c0_23] : memref<128x9xf32, #tpu.memory_space<vmem>>, vector<128x9xf32>
      %39 = vector.extract_strided_slice %38 {offsets = [0, 8], sizes = [128, 1], strides = [1, 1]} : vector<128x9xf32> to vector<128x1xf32>
      %40 = tpu.reciprocal %39 {approx = true} : vector<128x1xf32> -> vector<128x1xf32>
      %41 = vector.extract_strided_slice %38 {offsets = [0, 0], sizes = [128, 8], strides = [1, 1]} : vector<128x9xf32> to vector<128x8xf32>
      %42 = vector.broadcast %40 : vector<128x1xf32> to vector<128x8xf32>
      %43 = arith.mulf %41, %42 : vector<128x8xf32>
      %44 = arith.truncf %43 : vector<128x8xf32> to vector<128x8xbf16>
      %c0_24 = arith.constant 0 : index
      %c0_25 = arith.constant 0 : index
      %45 = vector.load %arg7[%c0_24, %c0_25] : memref<8x8xbf16, #tpu.memory_space<vmem>>, vector<8x8xbf16>
      %cst_26 = arith.constant dense<0.000000e+00> : vector<8x128xf32>
      %46 = tpu.matmul %45, %44, %cst_26 {dimension_numbers = #tpu.dot_dimension_numbers<[1], [1], [0], [0], [0, 0, 1, 0], [], []>} : vector<8x8xbf16>, vector<128x8xbf16>, vector<8x128xf32> -> vector<8x128xf32>
      %c0_27 = arith.constant 0 : index
      %c0_28 = arith.constant 0 : index
      %47 = vector.load %arg8[%c0_27, %c0_28] : memref<8x1xf32, #tpu.memory_space<vmem>>, vector<8x1xf32>
      %48 = vector.broadcast %47 : vector<8x1xf32> to vector<8x128xf32>
      %49 = arith.addf %46, %48 : vector<8x128xf32>
      %cst_29 = arith.constant 0.000000e+00 : f32
      %50 = vector.broadcast %cst_29 : f32 to vector<8x128xf32>
      %51 = arith.maximumf %49, %50 : vector<8x128xf32>
      %c0_30 = arith.constant 0 : index
      %c0_31 = arith.constant 0 : index
      %c0_32 = arith.constant 0 : index
      %52 = vector.load %arg9[%c0_30, %c0_31, %c0_32] : memref<1x8x128xf32, #tpu.memory_space<vmem>>, vector<1x8x128xf32>
      %53 = vector.shape_cast %52 : vector<1x8x128xf32> to vector<8x128xf32>
      %54 = vector.shape_cast %51 : vector<8x128xf32> to vector<1x8x128xf32>
      tpu.vector_store %arg9[%c0_30, %c0_31, %c0_32], %54 {strides = array<i32>} : memref<1x8x128xf32, #tpu.memory_space<vmem>>, vector<1x8x128xf32>,
    } else {
    }
    return
  }
  func.func @transform_0(%arg0: i32, %arg1: i32, %arg2: i32) -> (i32, i32, i32) {
    %c0_i32 = arith.constant 0 : i32
    %c0_i32_0 = arith.constant 0 : i32
    return %arg0, %c0_i32, %arg1 : i32, i32, i32
  }
  func.func @transform_1(%arg0: i32, %arg1: i32, %arg2: i32) -> (i32, i32, i32) {
    %c0_i32 = arith.constant 0 : i32
    %c0_i32_0 = arith.constant 0 : i32
    return %arg0, %c0_i32, %arg2 : i32, i32, i32
  }
  func.func @transform_2(%arg0: i32, %arg1: i32, %arg2: i32) -> (i32, i32) {
    %c0_i32 = arith.constant 0 : i32
    %c0_i32_0 = arith.constant 0 : i32
    %c0_i32_1 = arith.constant 0 : i32
    return %c0_i32, %c0_i32_0 : i32, i32
  }
  func.func @transform_3(%arg0: i32, %arg1: i32, %arg2: i32) -> (i32, i32) {
    %c0_i32 = arith.constant 0 : i32
    %c0_i32_0 = arith.constant 0 : i32
    %c0_i32_1 = arith.constant 0 : i32
    return %c0_i32, %c0_i32_0 : i32, i32
  }
  func.func @transform_4(%arg0: i32, %arg1: i32, %arg2: i32) -> (i32, i32) {
    %c0_i32 = arith.constant 0 : i32
    %c0_i32_0 = arith.constant 0 : i32
    %c0_i32_1 = arith.constant 0 : i32
    return %c0_i32, %c0_i32_0 : i32, i32
  }
  func.func @transform_5(%arg0: i32, %arg1: i32, %arg2: i32) -> (i32, i32) {
    %c0_i32 = arith.constant 0 : i32
    %c0_i32_0 = arith.constant 0 : i32
    %c0_i32_1 = arith.constant 0 : i32
    return %c0_i32, %c0_i32_0 : i32, i32
  }
  func.func @transform_6(%arg0: i32, %arg1: i32, %arg2: i32) -> (i32, i32, i32) {
    %c0_i32 = arith.constant 0 : i32
    %c0_i32_0 = arith.constant 0 : i32
    return %arg0, %c0_i32, %arg1 : i32, i32, i32
  }
}

</mosaic_0001>

<llo_original>
// kernel: tpu_custom_call.1
$region0: #{tpu_custom_call.1}
  #allocation0 [shape = 'u32[]', space=smem, size = 0x4, offset = 0x4, fixed_abs, tag = 'smem constant byte address 0x4 - core index']
  #allocation1 [shape = 'u32[144,128]{1,0:T(1,128)}', space=vmem, size = 0x12000, scoped, tag = 'internal scratch']
  #allocation2 [shape = 'bf16[8,128]{1,0:T(8,128)(2,1)}', space=vmem, size = 0x800, scoped, tag = 'scratch operand']
  #allocation3 [shape = 'f32[128,1]{1,0:T(8,128)}', space=vmem, size = 0x10000, scoped, tag = 'scratch operand']
  #allocation4 [shape = 'f32[128,9]{1,0:T(8,128)}', space=vmem, size = 0x10000, scoped, tag = 'scratch operand']
  %s0 = inlined_call_operand.vmem [shape: bf16[2,8,256], index: 0, kind: input, shape index: {}]
  %s1 = inlined_call_operand.vmem [shape: bf16[2,8,256], index: 1, kind: input, shape index: {}]
  %s2 = inlined_call_operand.vmem [shape: bf16[17,8], index: 2, kind: input, shape index: {}]
  %s3 = inlined_call_operand.vmem [shape: f32[17,1], index: 3, kind: input, shape index: {}]
  %s4 = inlined_call_operand.vmem [shape: bf16[8,8], index: 4, kind: input, shape index: {}]
  %s5 = inlined_call_operand.vmem [shape: f32[8,1], index: 5, kind: input, shape index: {}]
  %s6 = inlined_call_operand.hbm [shape: f32[2,8,256], index: 6, kind: output, shape index: {}]
  %s7 = sld [smem:[#allocation0]]
  $region65: #{tpu_custom_call.1} parent=0
    _
  %s9 = ssub.s32 1, %s7
  %s10 = scalar_select 0, %s9, %s7
  $region1: #{tpu_custom_call.1} parent=0
    #allocation5 [shape = 'u8[8192]{0}', space=vmem, size = 0x2000, scoped, tag = 'output window, operand 0']
    #allocation6 [shape = 's32[2]{0}', space=sflag, size = 0x8, scoped, tag = 'scoped memory for tpu_custom_call.1']
    %11 = vsyncpa [#allocation6], 0
    %s12 = scalar_lea.sflag [#allocation6], 1
    %13 = vsyncpa %s12, 0
    loop: start=0, step=1, limit=10
    $region2: #{tpu_custom_call.1} parent=1 // loop_pre_header
      _
    $region3: #{tpu_custom_call.1} parent=1 // loop_header
      %s15 = sphi 0, %s19
      %p16 = scmp.ge.s32.totalorder %s15, 10
      %s22 = sphi 0, %s41
      %s23 = sphi 0, %s37
      %s24 = sphi 0, %s33
      %s25 = sphi 0, %s22
      %s26 = sphi 0, %s23
      %s27 = sphi 0, %s24
      %s28 = sphi 0, %s25
      %s29 = sphi 0, %s26
      %s30 = sphi 0, %s27
      %s46 = sphi 0, %s48
      %s49 = sphi 0, %s46
      %s50 = sphi 0, %s49
      %s66 = sphi 0, %s50
      %s74 = sphi 0, %s76
      %s77 = sphi 0, %s74
      %s78 = sphi 0, %s77
      %s94 = sphi 0, %s78
      %s98 = sphi 0, %s98
      %s100 = sphi 0, %s98
      %s101 = sphi 0, %s100
      %s115 = sphi 0, %s101
      %s119 = sphi 0, %s119
      %s121 = sphi 0, %s119
      %s122 = sphi 0, %s121
      %s136 = sphi 0, %s122
      %s140 = sphi 0, %s140
      %s142 = sphi 0, %s140
      %s143 = sphi 0, %s142
      %s157 = sphi 0, %s143
      %s161 = sphi 0, %s161
      %s163 = sphi 0, %s161
      %s164 = sphi 0, %s163
      %s178 = sphi 0, %s164
      %s186 = sphi 0, %s188
      %s189 = sphi 0, %s186
      %s190 = sphi 0, %s189
      %s206 = sphi 0, %s190
    $region4: #{tpu_custom_call.1} parent=1 // loop_header_branch
      %18 = sbr.rel (%p16) target = $region8
    $region5: #{tpu_custom_call.1} parent=1 // loop_body
      %s20 = ssub.s32 %s15, 1
      %s21 = ssub.s32 %s15, 2
      %s31 = sadd.s32 1, %s24
      %p32 = scmp.ge.s32.totalorder %s31, 2
      %s33 = scalar_select %p32, 0, %s31
      %s34 = sadd.s32 1, %s23
      %s35 = scalar_select %p32, %s34, %s23
      %p36 = scmp.ge.s32.totalorder %s35, 2
      %s37 = scalar_select %p36, 0, %s35
      %s38 = sadd.s32 1, %s22
      %s39 = scalar_select %p36, %s38, %s22
      %p40 = scmp.ge.s32.totalorder %s39, 2
      %s41 = scalar_select %p40, 0, %s39
      %s42 = ssub.s32 %s22, %s41
      %s43 = ssub.s32 %s23, %s37
      %s44 = sor.u32 %s42, %s43
      %p45 = scmp.eq.s32.totalorder %s44, 0
      %s47 = sadd.s32 %s46, 1
      %s48 = scalar_select %p45, %s46, %s47
      %p51 = pneg %p45
      %p52 = scmp.eq.s32.totalorder %s15, 7
      %p53 = por %p51, %p52
      %p54 = scmp.ne.s32.totalorder %s46, %s49
      %p55 = scmp.eq.s32.totalorder %s15, 0
      %p56 = por %p54, %p55
      %p57 = scmp.ne.s32.totalorder %s46, %s49
      %p58 = scmp.eq.s32.totalorder %s20, 7
      %p59 = por %p57, %p58
      %p60 = scmp.ne.s32.totalorder %s49, %s50
      %p61 = scmp.eq.s32.totalorder %s20, 0
      %p62 = por %p60, %p61
      %p63 = scmp.ne.s32.totalorder %s49, %s50
      %p64 = scmp.eq.s32.totalorder %s21, 7
      %p65 = por %p63, %p64
      %p67 = scmp.ne.s32.totalorder %s50, %s66
      %p68 = scmp.eq.s32.totalorder %s21, 0
      %p69 = por %p67, %p68
      %s70 = ssub.s32 %s22, %s41
      %s71 = ssub.s32 %s24, %s33
      %s72 = sor.u32 %s70, %s71
      %p73 = scmp.eq.s32.totalorder %s72, 0
      %s75 = sadd.s32 %s74, 1
      %s76 = scalar_select %p73, %s74, %s75
      %p79 = pneg %p73
      %p80 = scmp.eq.s32.totalorder %s15, 7
      %p81 = por %p79, %p80
      %p82 = scmp.ne.s32.totalorder %s74, %s77
      %p83 = scmp.eq.s32.totalorder %s15, 0
      %p84 = por %p82, %p83
      %p85 = scmp.ne.s32.totalorder %s74, %s77
      %p86 = scmp.eq.s32.totalorder %s20, 7
      %p87 = por %p85, %p86
      %p88 = scmp.ne.s32.totalorder %s77, %s78
      %p89 = scmp.eq.s32.totalorder %s20, 0
      %p90 = por %p88, %p89
      %p91 = scmp.ne.s32.totalorder %s77, %s78
      %p92 = scmp.eq.s32.totalorder %s21, 7
      %p93 = por %p91, %p92
      %p95 = scmp.ne.s32.totalorder %s78, %s94
      %p96 = scmp.eq.s32.totalorder %s21, 0
      %p97 = por %p95, %p96
      %s99 = sadd.s32 %s98, 1
      %p102 = scmp.eq.s32.totalorder %s15, 7
      %p103 = scmp.ne.s32.totalorder %s98, %s100
      %p104 = scmp.eq.s32.totalorder %s15, 0
      %p105 = por %p103, %p104
      %p106 = scmp.ne.s32.totalorder %s98, %s100
      %p107 = scmp.eq.s32.totalorder %s20, 7
      %p108 = por %p106, %p107
      %p109 = scmp.ne.s32.totalorder %s100, %s101
      %p110 = scmp.eq.s32.totalorder %s20, 0
      %p111 = por %p109, %p110
      %p112 = scmp.ne.s32.totalorder %s100, %s101
      %p113 = scmp.eq.s32.totalorder %s21, 7
      %p114 = por %p112, %p113
      %p116 = scmp.ne.s32.totalorder %s101, %s115
      %p117 = scmp.eq.s32.totalorder %s21, 0
      %p118 = por %p116, %p117
      %s120 = sadd.s32 %s119, 1
      %p123 = scmp.eq.s32.totalorder %s15, 7
      %p124 = scmp.ne.s32.totalorder %s119, %s121
      %p125 = scmp.eq.s32.totalorder %s15, 0
      %p126 = por %p124, %p125
      %p127 = scmp.ne.s32.totalorder %s119, %s121
      %p128 = scmp.eq.s32.totalorder %s20, 7
      %p129 = por %p127, %p128
      %p130 = scmp.ne.s32.totalorder %s121, %s122
      %p131 = scmp.eq.s32.totalorder %s20, 0
      %p132 = por %p130, %p131
      %p133 = scmp.ne.s32.totalorder %s121, %s122
      %p134 = scmp.eq.s32.totalorder %s21, 7
      %p135 = por %p133, %p134
      %p137 = scmp.ne.s32.totalorder %s122, %s136
      %p138 = scmp.eq.s32.totalorder %s21, 0
      %p139 = por %p137, %p138
      %s141 = sadd.s32 %s140, 1
      %p144 = scmp.eq.s32.totalorder %s15, 7
      %p145 = scmp.ne.s32.totalorder %s140, %s142
      %p146 = scmp.eq.s32.totalorder %s15, 0
      %p147 = por %p145, %p146
      %p148 = scmp.ne.s32.totalorder %s140, %s142
      %p149 = scmp.eq.s32.totalorder %s20, 7
      %p150 = por %p148, %p149
      %p151 = scmp.ne.s32.totalorder %s142, %s143
      %p152 = scmp.eq.s32.totalorder %s20, 0
      %p153 = por %p151, %p152
      %p154 = scmp.ne.s32.totalorder %s142, %s143
      %p155 = scmp.eq.s32.totalorder %s21, 7
      %p156 = por %p154, %p155
      %p158 = scmp.ne.s32.totalorder %s143, %s157
      %p159 = scmp.eq.s32.totalorder %s21, 0
      %p160 = por %p158, %p159
      %s162 = sadd.s32 %s161, 1
      %p165 = scmp.eq.s32.totalorder %s15, 7
      %p166 = scmp.ne.s32.totalorder %s161, %s163
      %p167 = scmp.eq.s32.totalorder %s15, 0
      %p168 = por %p166, %p167
      %p169 = scmp.ne.s32.totalorder %s161, %s163
      %p170 = scmp.eq.s32.totalorder %s20, 7
      %p171 = por %p169, %p170
      %p172 = scmp.ne.s32.totalorder %s163, %s164
      %p173 = scmp.eq.s32.totalorder %s20, 0
      %p174 = por %p172, %p173
      %p175 = scmp.ne.s32.totalorder %s163, %s164
      %p176 = scmp.eq.s32.totalorder %s21, 7
      %p177 = por %p175, %p176
      %p179 = scmp.ne.s32.totalorder %s164, %s178
      %p180 = scmp.eq.s32.totalorder %s21, 0
      %p181 = por %p179, %p180
      %s182 = ssub.s32 %s22, %s41
      %s183 = ssub.s32 %s23, %s37
      %s184 = sor.u32 %s182, %s183
      %p185 = scmp.eq.s32.totalorder %s184, 0
      %s187 = sadd.s32 %s186, 1
      %s188 = scalar_select %p185, %s186, %s187
      %p191 = pneg %p185
      %p192 = scmp.eq.s32.totalorder %s15, 7
      %p193 = por %p191, %p192
      %p194 = scmp.ne.s32.totalorder %s186, %s189
      %p195 = scmp.eq.s32.totalorder %s15, 0
      %p196 = por %p194, %p195
      %p197 = scmp.ne.s32.totalorder %s186, %s189
      %p198 = scmp.eq.s32.totalorder %s20, 7
      %p199 = por %p197, %p198
      %p200 = scmp.ne.s32.totalorder %s189, %s190
      %p201 = scmp.eq.s32.totalorder %s20, 0
      %p202 = por %p200, %p201
      %p203 = scmp.ne.s32.totalorder %s189, %s190
      %p204 = scmp.eq.s32.totalorder %s21, 7
      %p205 = por %p203, %p204
      %p207 = scmp.ne.s32.totalorder %s190, %s206
      %p208 = scmp.eq.s32.totalorder %s21, 0
      %p209 = por %p207, %p208
      %p210 = scmp.le.s32.totalorder 1, %s15
      %p211 = scmp.lt.s32.totalorder %s15, 9
      %p212 = pnand %p210, %p211
      %p213 = pneg %p212
      // Predicated region
      $region9: #{tpu_custom_call.1} parent=5 // pred_check
        _
      $region10: #{tpu_custom_call.1} parent=5 // pred_check_branch
        %215 = sbr.rel (%p212) target = $region12
      $region11: #{tpu_custom_call.1} parent=5 // pred_region
        %s216 = ssub.s32 %s15, 1
        // Predicated region
        $region13: #{tpu_custom_call.1} parent=11 // pred_check
          %p217 = pneg %p111
        $region14: #{tpu_custom_call.1} parent=11 // pred_check_branch
          %219 = sbr.rel (%p217) target = $region16
        $region15: #{tpu_custom_call.1} parent=11 // pred_region
          _
        $region16: #{tpu_custom_call.1} parent=11 // pred_fallthru
          _
        // Predicated region
        $region17: #{tpu_custom_call.1} parent=11 // pred_check
          %p220 = pneg %p132
        $region18: #{tpu_custom_call.1} parent=11 // pred_check_branch
          %222 = sbr.rel (%p220) target = $region20
        $region19: #{tpu_custom_call.1} parent=11 // pred_region
          _
        $region20: #{tpu_custom_call.1} parent=11 // pred_fallthru
          _
        // Predicated region
        $region21: #{tpu_custom_call.1} parent=11 // pred_check
          %p223 = pneg %p153
        $region22: #{tpu_custom_call.1} parent=11 // pred_check_branch
          %225 = sbr.rel (%p223) target = $region24
        $region23: #{tpu_custom_call.1} parent=11 // pred_region
          _
        $region24: #{tpu_custom_call.1} parent=11 // pred_fallthru
          _
        // Predicated region
        $region25: #{tpu_custom_call.1} parent=11 // pred_check
          %p226 = pneg %p174
        $region26: #{tpu_custom_call.1} parent=11 // pred_check_branch
          %228 = sbr.rel (%p226) target = $region28
        $region27: #{tpu_custom_call.1} parent=11 // pred_region
          _
        $region28: #{tpu_custom_call.1} parent=11 // pred_fallthru
          _
      $region12: #{tpu_custom_call.1} parent=5 // pred_fallthru
        _
      %p229 = scmp.lt.s32.totalorder %s15, 8
      // Predicated region
      $region29: #{tpu_custom_call.1} parent=5 // pred_check
        %p230 = pneg %p229
      $region30: #{tpu_custom_call.1} parent=5 // pred_check_branch
        %232 = sbr.rel (%p230) target = $region32
      $region31: #{tpu_custom_call.1} parent=5 // pred_region
        // Predicated region
        $region33: #{tpu_custom_call.1} parent=31 // pred_check
          %p233 = pneg %p56
        $region34: #{tpu_custom_call.1} parent=31 // pred_check_branch
          %235 = sbr.rel (%p233) target = $region36
        $region35: #{tpu_custom_call.1} parent=31 // pred_region
          %p236 = scmp.lt.s32.totalorder %s22, 1
          %s237 = scalar_select %p236, %s22, 1
          %p238 = scmp.lt.s32.totalorder %s23, 1
          %s239 = scalar_select %p238, %s23, 1
          %s240 = smul.addr %s237, 2
          %s241 = sadd.s32 %s239, %s240
          %s242 = smul.addr %s241, 4
          %s243 = scalar_lea.vmem %s0, %s242
        $region36: #{tpu_custom_call.1} parent=31 // pred_fallthru
          _
        // Predicated region
        $region37: #{tpu_custom_call.1} parent=31 // pred_check
          %p244 = pneg %p84
        $region38: #{tpu_custom_call.1} parent=31 // pred_check_branch
          %246 = sbr.rel (%p244) target = $region40
        $region39: #{tpu_custom_call.1} parent=31 // pred_region
          %p247 = scmp.lt.s32.totalorder %s22, 1
          %s248 = scalar_select %p247, %s22, 1
          %p249 = scmp.lt.s32.totalorder %s24, 1
          %s250 = scalar_select %p249, %s24, 1
          %s251 = smul.addr %s248, 2
          %s252 = sadd.s32 %s250, %s251
          %s253 = smul.addr %s252, 4
          %s254 = scalar_lea.vmem %s1, %s253
        $region40: #{tpu_custom_call.1} parent=31 // pred_fallthru
          _
      $region32: #{tpu_custom_call.1} parent=5 // pred_fallthru
        _
      %p255 = scmp.le.s32.totalorder 1, %s15
      %p256 = scmp.lt.s32.totalorder %s15, 9
      %p257 = pnand %p255, %p256
      %p258 = pneg %p257
      // Predicated region
      $region41: #{tpu_custom_call.1} parent=5 // pred_check
        _
      $region42: #{tpu_custom_call.1} parent=5 // pred_check_branch
        %260 = sbr.rel (%p257) target = $region44
      $region43: #{tpu_custom_call.1} parent=5 // pred_region
        %s261 = ssub.s32 %s15, 1
        %p262 = scmp.lt.s32.totalorder %s25, 1
        %s263 = scalar_select %p262, %s25, 1
        %p264 = scmp.lt.s32.totalorder %s26, 1
        %s265 = scalar_select %p264, %s26, 1
        %s266 = smul.addr %s263, 2
        %s267 = sadd.s32 %s265, %s266
        %s268 = smul.addr %s267, 4
        %s269 = scalar_lea.vmem %s0, %s268
        %p270 = pneg %p62
        %p271 = pneg %p59
        %p272 = scmp.lt.s32.totalorder %s25, 1
        %s273 = scalar_select %p272, %s25, 1
        %p274 = scmp.lt.s32.totalorder %s27, 1
        %s275 = scalar_select %p274, %s27, 1
        %s276 = smul.addr %s273, 2
        %s277 = sadd.s32 %s275, %s276
        %s278 = smul.addr %s277, 4
        %s279 = scalar_lea.vmem %s1, %s278
        %p280 = pneg %p90
        %p281 = pneg %p87
        %p282 = pneg %p111
        %p283 = pneg %p108
        %p284 = pneg %p132
        %p285 = pneg %p129
        %p286 = pneg %p153
        %p287 = pneg %p150
        %p288 = pneg %p174
        %p289 = pneg %p171
        %p290 = pneg %p202
        %p291 = pneg %p199
        %s292 = sand.u32 %s189, 1
        %s293 = scalar_lea.sflag [#allocation6], %s292
        %s294 = sand.u32 %s189, 1
        %s295 = smul.addr %s294, 8
        %s296 = scalar_lea.vmem [#allocation5], %s295
        %p297 = scmp.lt.s32.totalorder %s25, 1
        %s298 = scalar_select %p297, %s25, 1
        %p299 = scmp.lt.s32.totalorder %s26, 1
        %s300 = scalar_select %p299, %s26, 1
        %s301 = smul.addr %s298, 2
        %s302 = sadd.s32 %s300, %s301
        %s303 = smul.addr %s302, 4
        %s304 = scalar_lea.vmem %s0, %s303
        %p305 = scmp.lt.s32.totalorder %s25, 1
        %s306 = scalar_select %p305, %s25, 1
        %p307 = scmp.lt.s32.totalorder %s27, 1
        %s308 = scalar_select %p307, %s27, 1
        %s309 = smul.addr %s306, 2
        %s310 = sadd.s32 %s308, %s309
        %s311 = smul.addr %s310, 4
        %s312 = scalar_lea.vmem %s1, %s311
        %p314 = scmp.eq.s32.totalorder %s27, 0
        // Predicated region
        $region45: #{tpu_custom_call.1} parent=43 // pred_check
          %p315 = pneg %p314
        $region46: #{tpu_custom_call.1} parent=43 // pred_check_branch
          %317 = sbr.rel (%p315) target = $region48
        $region47: #{tpu_custom_call.1} parent=43 // pred_region
          %v318 = vld [vmem:[%s2] sm:$0xf]
          %v319 = vld [vmem:[%s2 + $0x4] sm:$0xf]
          %v320 = vld [vmem:[%s2 + $0x8] sm:$0x1]
          %v321 = vld [vmem:[%s304] sm:$0xf]
          %v322 = vld [vmem:[%s3] sm:$0xff]
          %v323 = vld [vmem:[%s3 + $0x8] sm:$0xff]
          %v324 = vld [vmem:[%s3 + $0x10] sm:$0x1]
          %326 = vset.pattern.permute.xlu0 0
          %327 = vperm.xlu0 %326, %v322
          %v328 = vpop.permute.xlu0 %327
          %331 = vset.pattern.permute.xlu0 0
          %332 = vperm.xlu0 %331, %v323
          %v333 = vpop.permute.xlu0 %332
          %335 = vset.pattern.permute.xlu0 0
          %336 = vperm.xlu0 %335, %v324
          %v337 = vpop.permute.xlu0 %336
          %v341 = vunpack.c.l.b16 %v318
          %v342 = vunpack.c.l.b16 %v319
          %v343 = vunpack.c.l.b16 %v320
          %v344 = vpack.c.b16 %v342, %v341
          %v345 = vpack.c.b16 %v343, %v343
          %vm346 = vcmask 64512
          %v348 = vsel %vm346, %v344, 0
          %v351 = vsel %vm346, %v345, 0
          %vm353 = vcmask 1043456
          %v355 = vsel %vm353, %v321, 0
          %357 = vmatprep.subr.bf16.mxu0 0
          %358 = vmatpush1.bf16.msra.mxu0 %v355
          %359 = vmatprep.subr.bf16.mxu0 0
          %360 = vmatpush1.bf16.msra.mxu0 0
          %361 = vmatprep.subr.bf16.mxu0 0
          %362 = vmatpush1.bf16.msra.mxu0 0
          %363 = vmatprep.subr.bf16.mxu0 0
          %364 = vmatpush1.bf16.msra.mxu0 0
          %365 = vmatprep.subr.bf16.mxu0 0
          %366 = vmatpush1.bf16.msra.mxu0 0
          %367 = vmatprep.subr.bf16.mxu0 0
          %368 = vmatpush1.bf16.msra.mxu0 0
          %369 = vmatprep.subr.bf16.mxu0 0
          %370 = vmatpush1.bf16.msra.mxu0 0
          %371 = vmatprep.subr.bf16.mxu0 0
          %372 = vmatpush1.bf16.msra.mxu0 0
          %373 = vmatprep.subr.bf16.mxu0 0
          %374 = vmatpush1.bf16.msra.mxu0 0
          %375 = vmatprep.subr.bf16.mxu0 0
          %376 = vmatpush1.bf16.msra.mxu0 0
          %377 = vmatprep.subr.bf16.mxu0 0
          %378 = vmatpush1.bf16.msra.mxu0 0
          %379 = vmatprep.subr.bf16.mxu0 0
          %380 = vmatpush1.bf16.msra.mxu0 0
          %381 = vmatprep.subr.bf16.mxu0 0
          %382 = vmatpush1.bf16.msra.mxu0 0
          %383 = vmatprep.subr.bf16.mxu0 0
          %384 = vmatpush1.bf16.msra.mxu0 0
          %385 = vmatprep.subr.bf16.mxu0 0
          %386 = vmatpush1.bf16.msra.mxu0 0
          %387 = vmatprep.subr.bf16.mxu0 0
          %388 = vmatpush1.bf16.msra.mxu0 0
          %389 = vmatprep.mubr.bf16.mxu0 0
          %390 = vmatmul.mubr.bf16.gmra.mrb[0].mxu0 %v348
          %v391 = vpop.f32.mrb[0].mxu0
          %v392 = vadd.f32 %v328, %v391
          %v393 = vpop.f32.mrb[0].mxu0
          %v394 = vpop.f32.mrb[0].mxu0
          %v395 = vpop.f32.mrb[0].mxu0
          %396 = vmatprep.mubr.bf16.mxu0 0
          %397 = vmatmul.mubr.bf16.gmra.mrb[0].mxu0 %v351
          %v398 = vpop.f32.mrb[0].mxu0
          %v399 = vpop.f32.mrb[0].mxu0
          %v400 = vpop.f32.mrb[0].mxu0
          %v401 = vpop.f32.mrb[0].mxu0
          %402 = vdwg.mxu0
          %v403 = vmax.f32 %v392, 0.0
          %v404 = vpack.c.bf16 %v403, %v403
          %405 = vst [vmem:[#allocation2] sm:$0xf] %v404
          %vm406 = vcmask 7168
          %407 = vst.msk [vmem:[#allocation3] sm:$0xff] %vm406, -inf
          %408 = vst.msk [vmem:[#allocation3 + $0x8] sm:$0xff] %vm406, -inf
          %409 = vst.msk [vmem:[#allocation3 + $0x10] sm:$0xff] %vm406, -inf
          %410 = vst.msk [vmem:[#allocation3 + $0x18] sm:$0xff] %vm406, -inf
          %411 = vst.msk [vmem:[#allocation3 + $0x20] sm:$0xff] %vm406, -inf
          %412 = vst.msk [vmem:[#allocation3 + $0x28] sm:$0xff] %vm406, -inf
          %413 = vst.msk [vmem:[#allocation3 + $0x30] sm:$0xff] %vm406, -inf
          %414 = vst.msk [vmem:[#allocation3 + $0x38] sm:$0xff] %vm406, -inf
          %415 = vst.msk [vmem:[#allocation3 + $0x40] sm:$0xff] %vm406, -inf
          %416 = vst.msk [vmem:[#allocation3 + $0x48] sm:$0xff] %vm406, -inf
          %417 = vst.msk [vmem:[#allocation3 + $0x50] sm:$0xff] %vm406, -inf
          %418 = vst.msk [vmem:[#allocation3 + $0x58] sm:$0xff] %vm406, -inf
          %419 = vst.msk [vmem:[#allocation3 + $0x60] sm:$0xff] %vm406, -inf
          %420 = vst.msk [vmem:[#allocation3 + $0x68] sm:$0xff] %vm406, -inf
          %421 = vst.msk [vmem:[#allocation3 + $0x70] sm:$0xff] %vm406, -inf
          %422 = vst.msk [vmem:[#allocation3 + $0x78] sm:$0xff] %vm406, -inf
          %vm423 = vcmask 72704
          %424 = vst.msk [vmem:[#allocation4] sm:$0xff] %vm423, 0.0
          %425 = vst.msk [vmem:[#allocation4 + $0x8] sm:$0xff] %vm423, 0.0
          %426 = vst.msk [vmem:[#allocation4 + $0x10] sm:$0xff] %vm423, 0.0
          %427 = vst.msk [vmem:[#allocation4 + $0x18] sm:$0xff] %vm423, 0.0
          %428 = vst.msk [vmem:[#allocation4 + $0x20] sm:$0xff] %vm423, 0.0
          %429 = vst.msk [vmem:[#allocation4 + $0x28] sm:$0xff] %vm423, 0.0
          %430 = vst.msk [vmem:[#allocation4 + $0x30] sm:$0xff] %vm423, 0.0
          %431 = vst.msk [vmem:[#allocation4 + $0x38] sm:$0xff] %vm423, 0.0
          %432 = vst.msk [vmem:[#allocation4 + $0x40] sm:$0xff] %vm423, 0.0
          %433 = vst.msk [vmem:[#allocation4 + $0x48] sm:$0xff] %vm423, 0.0
          %434 = vst.msk [vmem:[#allocation4 + $0x50] sm:$0xff] %vm423, 0.0
          %435 = vst.msk [vmem:[#allocation4 + $0x58] sm:$0xff] %vm423, 0.0
          %436 = vst.msk [vmem:[#allocation4 + $0x60] sm:$0xff] %vm423, 0.0
          %437 = vst.msk [vmem:[#allocation4 + $0x68] sm:$0xff] %vm423, 0.0
          %438 = vst.msk [vmem:[#allocation4 + $0x70] sm:$0xff] %vm423, 0.0
          %439 = vst.msk [vmem:[#allocation4 + $0x78] sm:$0xff] %vm423, 0.0
        $region48: #{tpu_custom_call.1} parent=43 // pred_fallthru
          _
        %v440 = vld [vmem:[%s2] sm:$0xf]
        %v441 = vld [vmem:[%s2 + $0x4] sm:$0xf]
        %v442 = vld [vmem:[%s2 + $0x8] sm:$0x1]
        %v443 = vld [vmem:[%s312] sm:$0xf]
        %v444 = vld [vmem:[%s3] sm:$0xff]
        %v445 = vld [vmem:[%s3 + $0x8] sm:$0xff]
        %v446 = vld [vmem:[%s3 + $0x10] sm:$0x1]
        %448 = vset.pattern.permute.xlu0 0
        %449 = vperm.xlu0 %448, %v444
        %v450 = vpop.permute.xlu0 %449
        %453 = vset.pattern.permute.xlu0 0
        %454 = vperm.xlu0 %453, %v445
        %v455 = vpop.permute.xlu0 %454
        %458 = vset.pattern.permute.xlu0 0
        %459 = vperm.xlu0 %458, %v446
        %v460 = vpop.permute.xlu0 %459
        %v465 = vunpack.c.l.b16 %v440
        %v466 = vunpack.c.l.b16 %v441
        %v467 = vunpack.c.l.b16 %v442
        %v468 = vpack.c.b16 %v466, %v465
        %v469 = vpack.c.b16 %v467, %v467
        %vm470 = vcmask 64512
        %v472 = vsel %vm470, %v468, 0
        %v475 = vsel %vm470, %v469, 0
        %vm477 = vcmask 1043456
        %v479 = vsel %vm477, %v443, 0
        %481 = vmatprep.subr.bf16.mxu0 0
        %482 = vmatpush1.bf16.msra.mxu0 %v479
        %483 = vmatprep.subr.bf16.mxu0 0
        %484 = vmatpush1.bf16.msra.mxu0 0
        %485 = vmatprep.subr.bf16.mxu0 0
        %486 = vmatpush1.bf16.msra.mxu0 0
        %487 = vmatprep.subr.bf16.mxu0 0
        %488 = vmatpush1.bf16.msra.mxu0 0
        %489 = vmatprep.subr.bf16.mxu0 0
        %490 = vmatpush1.bf16.msra.mxu0 0
        %491 = vmatprep.subr.bf16.mxu0 0
        %492 = vmatpush1.bf16.msra.mxu0 0
        %493 = vmatprep.subr.bf16.mxu0 0
        %494 = vmatpush1.bf16.msra.mxu0 0
        %495 = vmatprep.subr.bf16.mxu0 0
        %496 = vmatpush1.bf16.msra.mxu0 0
        %497 = vmatprep.subr.bf16.mxu0 0
        %498 = vmatpush1.bf16.msra.mxu0 0
        %499 = vmatprep.subr.bf16.mxu0 0
        %500 = vmatpush1.bf16.msra.mxu0 0
        %501 = vmatprep.subr.bf16.mxu0 0
        %502 = vmatpush1.bf16.msra.mxu0 0
        %503 = vmatprep.subr.bf16.mxu0 0
        %504 = vmatpush1.bf16.msra.mxu0 0
        %505 = vmatprep.subr.bf16.mxu0 0
        %506 = vmatpush1.bf16.msra.mxu0 0
        %507 = vmatprep.subr.bf16.mxu0 0
        %508 = vmatpush1.bf16.msra.mxu0 0
        %509 = vmatprep.subr.bf16.mxu0 0
        %510 = vmatpush1.bf16.msra.mxu0 0
        %511 = vmatprep.subr.bf16.mxu0 0
        %512 = vmatpush1.bf16.msra.mxu0 0
        %513 = vmatprep.mubr.bf16.mxu0 0
        %514 = vmatmul.mubr.bf16.gmra.mrb[0].mxu0 %v472
        %v515 = vpop.f32.mrb[0].mxu0
        %v516 = vadd.f32 %v450, %v515
        %v517 = vpop.f32.mrb[0].mxu0
        %v518 = vpop.f32.mrb[0].mxu0
        %v519 = vadd.f32 %v455, %v518
        %v520 = vpop.f32.mrb[0].mxu0
        %521 = vmatprep.mubr.bf16.mxu0 0
        %522 = vmatmul.mubr.bf16.gmra.mrb[0].mxu0 %v475
        %v523 = vpop.f32.mrb[0].mxu0
        %v524 = vadd.f32 %v460, %v523
        %v525 = vpop.f32.mrb[0].mxu0
        %v526 = vpop.f32.mrb[0].mxu0
        %v527 = vpop.f32.mrb[0].mxu0
        %528 = vdwg.mxu0
        %v529 = vmax.f32 %v516, 0.0
        %v530 = vpack.c.bf16 %v529, %v529
        %v531 = vpack.c.bf16 %v524, %v519
        %v532 = vld [vmem:[#allocation2] sm:$0xf]
        %533 = vxpose.xlu0.c.b16.start [1/8] %v532, 128
        %534 = vxpose.xlu0.c.b16.cont [2/8] 0, 128
        %535 = vxpose.xlu0.c.b16.cont [3/8] 0, 128
        %536 = vxpose.xlu0.c.b16.cont [4/8] 0, 128
        %537 = vxpose.xlu0.c.b16.cont [5/8] 0, 128
        %538 = vxpose.xlu0.c.b16.cont [6/8] 0, 128
        %539 = vxpose.xlu0.c.b16.cont [7/8] 0, 128
        %540 = vxpose.xlu0.c.b16.end [8/8] 0, 128
        %v541 = vpop.trf.xlu0
        %v542 = vpop.trf.xlu0
        %v543 = vpop.trf.xlu0
        %v544 = vpop.trf.xlu0
        %v545 = vpop.trf.xlu0
        %v546 = vpop.trf.xlu0
        %v547 = vpop.trf.xlu0
        %v548 = vpop.trf.xlu0
        %v550 = vsel %vm470, %v541, 0
        %v553 = vsel %vm470, %v542, 0
        %v556 = vsel %vm470, %v543, 0
        %v559 = vsel %vm470, %v544, 0
        %v562 = vsel %vm470, %v545, 0
        %v565 = vsel %vm470, %v546, 0
        %v568 = vsel %vm470, %v547, 0
        %v571 = vsel %vm470, %v548, 0
        %v574 = vsel %vm477, %v530, 0
        %576 = vmatprep.subr.bf16.mxu0 0
        %577 = vmatpush1.bf16.msra.mxu0 %v574
        %578 = vmatprep.subr.bf16.mxu0 0
        %579 = vmatpush1.bf16.msra.mxu0 0
        %580 = vmatprep.subr.bf16.mxu0 0
        %581 = vmatpush1.bf16.msra.mxu0 0
        %582 = vmatprep.subr.bf16.mxu0 0
        %583 = vmatpush1.bf16.msra.mxu0 0
        %584 = vmatprep.subr.bf16.mxu0 0
        %585 = vmatpush1.bf16.msra.mxu0 0
        %586 = vmatprep.subr.bf16.mxu0 0
        %587 = vmatpush1.bf16.msra.mxu0 0
        %588 = vmatprep.subr.bf16.mxu0 0
        %589 = vmatpush1.bf16.msra.mxu0 0
        %590 = vmatprep.subr.bf16.mxu0 0
        %591 = vmatpush1.bf16.msra.mxu0 0
        %592 = vmatprep.subr.bf16.mxu0 0
        %593 = vmatpush1.bf16.msra.mxu0 0
        %594 = vmatprep.subr.bf16.mxu0 0
        %595 = vmatpush1.bf16.msra.mxu0 0
        %596 = vmatprep.subr.bf16.mxu0 0
        %597 = vmatpush1.bf16.msra.mxu0 0
        %598 = vmatprep.subr.bf16.mxu0 0
        %599 = vmatpush1.bf16.msra.mxu0 0
        %600 = vmatprep.subr.bf16.mxu0 0
        %601 = vmatpush1.bf16.msra.mxu0 0
        %602 = vmatprep.subr.bf16.mxu0 0
        %603 = vmatpush1.bf16.msra.mxu0 0
        %604 = vmatprep.subr.bf16.mxu0 0
        %605 = vmatpush1.bf16.msra.mxu0 0
        %606 = vmatprep.subr.bf16.mxu0 0
        %607 = vmatpush1.bf16.msra.mxu0 0
        %608 = vmatprep.mubr.bf16.mxu0 0
        %609 = vmatmul.mubr.bf16.gmra.mrb[0].mxu0 %v550
        %v610 = vpop.f32.mrb[0].mxu0
        %v611 = vadd.f32 0.0, %v610
        %v612 = vpop.f32.mrb[0].mxu0
        %v613 = vpop.f32.mrb[0].mxu0
        %v614 = vadd.f32 0.0, %v613
        %v615 = vpop.f32.mrb[0].mxu0
        %616 = vmatprep.mubr.bf16.mxu0 0
        %617 = vmatmul.mubr.bf16.gmra.mrb[0].mxu0 %v553
        %v618 = vpop.f32.mrb[0].mxu0
        %v619 = vadd.f32 0.0, %v618
        %v620 = vpop.f32.mrb[0].mxu0
        %v621 = vpop.f32.mrb[0].mxu0
        %v622 = vadd.f32 0.0, %v621
        %v623 = vpop.f32.mrb[0].mxu0
        %624 = vmatprep.mubr.bf16.mxu0 0
        %625 = vmatmul.mubr.bf16.gmra.mrb[0].mxu0 %v556
        %v626 = vpop.f32.mrb[0].mxu0
        %v627 = vadd.f32 0.0, %v626
        %v628 = vpop.f32.mrb[0].mxu0
        %v629 = vpop.f32.mrb[0].mxu0
        %v630 = vadd.f32 0.0, %v629
        %v631 = vpop.f32.mrb[0].mxu0
        %632 = vmatprep.mubr.bf16.mxu0 0
        %633 = vmatmul.mubr.bf16.gmra.mrb[0].mxu0 %v559
        %v634 = vpop.f32.mrb[0].mxu0
        %v635 = vadd.f32 0.0, %v634
        %v636 = vpop.f32.mrb[0].mxu0
        %v637 = vpop.f32.mrb[0].mxu0
        %v638 = vadd.f32 0.0, %v637
        %v639 = vpop.f32.mrb[0].mxu0
        %640 = vmatprep.mubr.bf16.mxu0 0
        %641 = vmatmul.mubr.bf16.gmra.mrb[0].mxu0 %v562
        %v642 = vpop.f32.mrb[0].mxu0
        %v643 = vadd.f32 0.0, %v642
        %v644 = vpop.f32.mrb[0].mxu0
        %v645 = vpop.f32.mrb[0].mxu0
        %v646 = vadd.f32 0.0, %v645
        %v647 = vpop.f32.mrb[0].mxu0
        %648 = vmatprep.mubr.bf16.mxu0 0
        %649 = vmatmul.mubr.bf16.gmra.mrb[0].mxu0 %v565
        %v650 = vpop.f32.mrb[0].mxu0
        %v651 = vadd.f32 0.0, %v650
        %v652 = vpop.f32.mrb[0].mxu0
        %v653 = vpop.f32.mrb[0].mxu0
        %v654 = vadd.f32 0.0, %v653
        %v655 = vpop.f32.mrb[0].mxu0
        %656 = vmatprep.mubr.bf16.mxu0 0
        %657 = vmatmul.mubr.bf16.gmra.mrb[0].mxu0 %v568
        %v658 = vpop.f32.mrb[0].mxu0
        %v659 = vadd.f32 0.0, %v658
        %v660 = vpop.f32.mrb[0].mxu0
        %v661 = vpop.f32.mrb[0].mxu0
        %v662 = vadd.f32 0.0, %v661
        %v663 = vpop.f32.mrb[0].mxu0
        %664 = vmatprep.mubr.bf16.mxu0 0
        %665 = vmatmul.mubr.bf16.gmra.mrb[0].mxu0 %v571
        %v666 = vpop.f32.mrb[0].mxu0
        %v667 = vadd.f32 0.0, %v666
        %v668 = vpop.f32.mrb[0].mxu0
        %v669 = vpop.f32.mrb[0].mxu0
        %v670 = vadd.f32 0.0, %v669
        %v671 = vpop.f32.mrb[0].mxu0
        %672 = vdwg.mxu0
        %v673 = vld [vmem:[#allocation3] sm:$0xff]
        %v674 = vld [vmem:[#allocation3 + $0x8] sm:$0xff]
        %v675 = vld [vmem:[#allocation3 + $0x10] sm:$0xff]
        %v676 = vld [vmem:[#allocation3 + $0x18] sm:$0xff]
        %v677 = vld [vmem:[#allocation3 + $0x20] sm:$0xff]
        %v678 = vld [vmem:[#allocation3 + $0x28] sm:$0xff]
        %v679 = vld [vmem:[#allocation3 + $0x30] sm:$0xff]
        %v680 = vld [vmem:[#allocation3 + $0x38] sm:$0xff]
        %v681 = vld [vmem:[#allocation3 + $0x40] sm:$0xff]
        %v682 = vld [vmem:[#allocation3 + $0x48] sm:$0xff]
        %v683 = vld [vmem:[#allocation3 + $0x50] sm:$0xff]
        %v684 = vld [vmem:[#allocation3 + $0x58] sm:$0xff]
        %v685 = vld [vmem:[#allocation3 + $0x60] sm:$0xff]
        %v686 = vld [vmem:[#allocation3 + $0x68] sm:$0xff]
        %v687 = vld [vmem:[#allocation3 + $0x70] sm:$0xff]
        %v688 = vld [vmem:[#allocation3 + $0x78] sm:$0xff]
        %689 = vmax.xlane.f32.xlu0 %v611
        %v690 = vpop.xlane.xlu0 %689
        %691 = vmax.xlane.f32.xlu0 %v614
        %v692 = vpop.xlane.xlu0 %691
        %693 = vmax.xlane.f32.xlu0 %v619
        %v694 = vpop.xlane.xlu0 %693
        %695 = vmax.xlane.f32.xlu0 %v622
        %v696 = vpop.xlane.xlu0 %695
        %697 = vmax.xlane.f32.xlu0 %v627
        %v698 = vpop.xlane.xlu0 %697
        %699 = vmax.xlane.f32.xlu0 %v630
        %v700 = vpop.xlane.xlu0 %699
        %701 = vmax.xlane.f32.xlu0 %v635
        %v702 = vpop.xlane.xlu0 %701
        %703 = vmax.xlane.f32.xlu0 %v638
        %v704 = vpop.xlane.xlu0 %703
        %705 = vmax.xlane.f32.xlu0 %v643
        %v706 = vpop.xlane.xlu0 %705
        %707 = vmax.xlane.f32.xlu0 %v646
        %v708 = vpop.xlane.xlu0 %707
        %709 = vmax.xlane.f32.xlu0 %v651
        %v710 = vpop.xlane.xlu0 %709
        %711 = vmax.xlane.f32.xlu0 %v654
        %v712 = vpop.xlane.xlu0 %711
        %713 = vmax.xlane.f32.xlu0 %v659
        %v714 = vpop.xlane.xlu0 %713
        %715 = vmax.xlane.f32.xlu0 %v662
        %v716 = vpop.xlane.xlu0 %715
        %717 = vmax.xlane.f32.xlu0 %v667
        %v718 = vpop.xlane.xlu0 %717
        %719 = vmax.xlane.f32.xlu0 %v670
        %v720 = vpop.xlane.xlu0 %719
        %v721 = vmax.f32 %v673, %v690
        %v722 = vmax.f32 %v674, %v692
        %v723 = vmax.f32 %v675, %v694
        %v724 = vmax.f32 %v676, %v696
        %v725 = vmax.f32 %v677, %v698
        %v726 = vmax.f32 %v678, %v700
        %v727 = vmax.f32 %v679, %v702
        %v728 = vmax.f32 %v680, %v704
        %v729 = vmax.f32 %v681, %v706
        %v730 = vmax.f32 %v682, %v708
        %v731 = vmax.f32 %v683, %v710
        %v732 = vmax.f32 %v684, %v712
        %v733 = vmax.f32 %v685, %v714
        %v734 = vmax.f32 %v686, %v716
        %v735 = vmax.f32 %v687, %v718
        %v736 = vmax.f32 %v688, %v720
        %v737 = vsub.f32 %v673, %v721
        %v738 = vsub.f32 %v674, %v722
        %v739 = vsub.f32 %v675, %v723
        %v740 = vsub.f32 %v676, %v724
        %v741 = vsub.f32 %v677, %v725
        %v742 = vsub.f32 %v678, %v726
        %v743 = vsub.f32 %v679, %v727
        %v744 = vsub.f32 %v680, %v728
        %v745 = vsub.f32 %v681, %v729
        %v746 = vsub.f32 %v682, %v730
        %v747 = vsub.f32 %v683, %v731
        %v748 = vsub.f32 %v684, %v732
        %v749 = vsub.f32 %v685, %v733
        %v750 = vsub.f32 %v686, %v734
        %v751 = vsub.f32 %v687, %v735
        %v752 = vsub.f32 %v688, %v736
        %v753 = vmul.f32 %v737, 1.442695
        %v754 = vpow.pop %v753
        %v755 = vmul.f32 %v738, 1.442695
        %v756 = vpow.pop %v755
        %v757 = vmul.f32 %v739, 1.442695
        %v758 = vpow.pop %v757
        %v759 = vmul.f32 %v740, 1.442695
        %v760 = vpow.pop %v759
        %v761 = vmul.f32 %v741, 1.442695
        %v762 = vpow.pop %v761
        %v763 = vmul.f32 %v742, 1.442695
        %v764 = vpow.pop %v763
        %v765 = vmul.f32 %v743, 1.442695
        %v766 = vpow.pop %v765
        %v767 = vmul.f32 %v744, 1.442695
        %v768 = vpow.pop %v767
        %v769 = vmul.f32 %v745, 1.442695
        %v770 = vpow.pop %v769
        %v771 = vmul.f32 %v746, 1.442695
        %v772 = vpow.pop %v771
        %v773 = vmul.f32 %v747, 1.442695
        %v774 = vpow.pop %v773
        %v775 = vmul.f32 %v748, 1.442695
        %v776 = vpow.pop %v775
        %v777 = vmul.f32 %v749, 1.442695
        %v778 = vpow.pop %v777
        %v779 = vmul.f32 %v750, 1.442695
        %v780 = vpow.pop %v779
        %v781 = vmul.f32 %v751, 1.442695
        %v782 = vpow.pop %v781
        %v783 = vmul.f32 %v752, 1.442695
        %v784 = vpow.pop %v783
        %786 = vset.pattern.permute.xlu0 0
        %787 = vperm.xlu0 %786, %v721
        %v788 = vpop.permute.xlu0 %787
        %791 = vset.pattern.permute.xlu0 0
        %792 = vperm.xlu0 %791, %v722
        %v793 = vpop.permute.xlu0 %792
        %796 = vset.pattern.permute.xlu0 0
        %797 = vperm.xlu0 %796, %v723
        %v798 = vpop.permute.xlu0 %797
        %801 = vset.pattern.permute.xlu0 0
        %802 = vperm.xlu0 %801, %v724
        %v803 = vpop.permute.xlu0 %802
        %806 = vset.pattern.permute.xlu0 0
        %807 = vperm.xlu0 %806, %v725
        %v808 = vpop.permute.xlu0 %807
        %811 = vset.pattern.permute.xlu0 0
        %812 = vperm.xlu0 %811, %v726
        %v813 = vpop.permute.xlu0 %812
        %816 = vset.pattern.permute.xlu0 0
        %817 = vperm.xlu0 %816, %v727
        %v818 = vpop.permute.xlu0 %817
        %821 = vset.pattern.permute.xlu0 0
        %822 = vperm.xlu0 %821, %v728
        %v823 = vpop.permute.xlu0 %822
        %826 = vset.pattern.permute.xlu0 0
        %827 = vperm.xlu0 %826, %v729
        %v828 = vpop.permute.xlu0 %827
        %831 = vset.pattern.permute.xlu0 0
        %832 = vperm.xlu0 %831, %v730
        %v833 = vpop.permute.xlu0 %832
        %836 = vset.pattern.permute.xlu0 0
        %837 = vperm.xlu0 %836, %v731
        %v838 = vpop.permute.xlu0 %837
        %841 = vset.pattern.permute.xlu0 0
        %842 = vperm.xlu0 %841, %v732
        %v843 = vpop.permute.xlu0 %842
        %846 = vset.pattern.permute.xlu0 0
        %847 = vperm.xlu0 %846, %v733
        %v848 = vpop.permute.xlu0 %847
        %851 = vset.pattern.permute.xlu0 0
        %852 = vperm.xlu0 %851, %v734
        %v853 = vpop.permute.xlu0 %852
        %856 = vset.pattern.permute.xlu0 0
        %857 = vperm.xlu0 %856, %v735
        %v858 = vpop.permute.xlu0 %857
        %861 = vset.pattern.permute.xlu0 0
        %862 = vperm.xlu0 %861, %v736
        %v863 = vpop.permute.xlu0 %862
        %v865 = vsub.f32 %v611, %v788
        %v866 = vsub.f32 %v614, %v793
        %v867 = vsub.f32 %v619, %v798
        %v868 = vsub.f32 %v622, %v803
        %v869 = vsub.f32 %v627, %v808
        %v870 = vsub.f32 %v630, %v813
        %v871 = vsub.f32 %v635, %v818
        %v872 = vsub.f32 %v638, %v823
        %v873 = vsub.f32 %v643, %v828
        %v874 = vsub.f32 %v646, %v833
        %v875 = vsub.f32 %v651, %v838
        %v876 = vsub.f32 %v654, %v843
        %v877 = vsub.f32 %v659, %v848
        %v878 = vsub.f32 %v662, %v853
        %v879 = vsub.f32 %v667, %v858
        %v880 = vsub.f32 %v670, %v863
        %v881 = vmul.f32 %v865, 1.442695
        %v882 = vpow.pop %v881
        %v883 = vmul.f32 %v866, 1.442695
        %v884 = vpow.pop %v883
        %v885 = vmul.f32 %v867, 1.442695
        %v886 = vpow.pop %v885
        %v887 = vmul.f32 %v868, 1.442695
        %v888 = vpow.pop %v887
        %v889 = vmul.f32 %v869, 1.442695
        %v890 = vpow.pop %v889
        %v891 = vmul.f32 %v870, 1.442695
        %v892 = vpow.pop %v891
        %v893 = vmul.f32 %v871, 1.442695
        %v894 = vpow.pop %v893
        %v895 = vmul.f32 %v872, 1.442695
        %v896 = vpow.pop %v895
        %v897 = vmul.f32 %v873, 1.442695
        %v898 = vpow.pop %v897
        %v899 = vmul.f32 %v874, 1.442695
        %v900 = vpow.pop %v899
        %v901 = vmul.f32 %v875, 1.442695
        %v902 = vpow.pop %v901
        %v903 = vmul.f32 %v876, 1.442695
        %v904 = vpow.pop %v903
        %v905 = vmul.f32 %v877, 1.442695
        %v906 = vpow.pop %v905
        %v907 = vmul.f32 %v878, 1.442695
        %v908 = vpow.pop %v907
        %v909 = vmul.f32 %v879, 1.442695
        %v910 = vpow.pop %v909
        %v911 = vmul.f32 %v880, 1.442695
        %v912 = vpow.pop %v911
        %v913 = vpack.c.bf16 %v884, %v882
        %v914 = vpack.c.bf16 %v888, %v886
        %v915 = vpack.c.bf16 %v892, %v890
        %v916 = vpack.c.bf16 %v896, %v894
        %v917 = vpack.c.bf16 %v900, %v898
        %v918 = vpack.c.bf16 %v904, %v902
        %v919 = vpack.c.bf16 %v908, %v906
        %v920 = vpack.c.bf16 %v912, %v910
        %921 = vmatprep.subr.bf16.mxu0 0
        %922 = vmatpush1.bf16.xpose.msra.mxu0 %v531
        %923 = vmatprep.subr.bf16.mxu0 0
        %924 = vmatpush1.bf16.xpose.msra.mxu0 0
        %925 = vmatprep.subr.bf16.mxu0 0
        %926 = vmatpush1.bf16.xpose.msra.mxu0 0
        %927 = vmatprep.subr.bf16.mxu0 0
        %928 = vmatpush1.bf16.xpose.msra.mxu0 0
        %929 = vmatprep.subr.bf16.mxu0 0
        %930 = vmatpush1.bf16.xpose.msra.mxu0 0
        %931 = vmatprep.subr.bf16.mxu0 0
        %932 = vmatpush1.bf16.xpose.msra.mxu0 0
        %933 = vmatprep.subr.bf16.mxu0 0
        %934 = vmatpush1.bf16.xpose.msra.mxu0 0
        %935 = vmatprep.subr.bf16.mxu0 0
        %936 = vmatpush1.bf16.xpose.msra.mxu0 0
        %937 = vmatprep.subr.bf16.mxu0 0
        %938 = vmatpush1.bf16.xpose.msra.mxu0 0
        %939 = vmatprep.subr.bf16.mxu0 0
        %940 = vmatpush1.bf16.xpose.msra.mxu0 0
        %941 = vmatprep.subr.bf16.mxu0 0
        %942 = vmatpush1.bf16.xpose.msra.mxu0 0
        %943 = vmatprep.subr.bf16.mxu0 0
        %944 = vmatpush1.bf16.xpose.msra.mxu0 0
        %945 = vmatprep.subr.bf16.mxu0 0
        %946 = vmatpush1.bf16.xpose.msra.mxu0 0
        %947 = vmatprep.subr.bf16.mxu0 0
        %948 = vmatpush1.bf16.xpose.msra.mxu0 0
        %949 = vmatprep.subr.bf16.mxu0 0
        %950 = vmatpush1.bf16.xpose.msra.mxu0 0
        %951 = vmatprep.subr.bf16.mxu0 0
        %952 = vmatpush1.bf16.xpose.msra.mxu0 0
        %953 = vmatprep.mubr.bf16.mxu0 0
        %954 = vmatmul.mubr.bf16.gmra.mrb[0].mxu0 %v913
        %v955 = vpop.f32.mrb[0].mxu0
        %v956 = vadd.f32 0.0, %v955
        %v957 = vpop.f32.mrb[0].mxu0
        %v958 = vpop.f32.mrb[0].mxu0
        %v959 = vadd.f32 0.0, %v958
        %v960 = vpop.f32.mrb[0].mxu0
        %961 = vmatprep.mubr.bf16.mxu0 0
        %962 = vmatmul.mubr.bf16.gmra.mrb[0].mxu0 %v914
        %v963 = vpop.f32.mrb[0].mxu0
        %v964 = vadd.f32 0.0, %v963
        %v965 = vpop.f32.mrb[0].mxu0
        %v966 = vpop.f32.mrb[0].mxu0
        %v967 = vadd.f32 0.0, %v966
        %v968 = vpop.f32.mrb[0].mxu0
        %969 = vmatprep.mubr.bf16.mxu0 0
        %970 = vmatmul.mubr.bf16.gmra.mrb[0].mxu0 %v915
        %v971 = vpop.f32.mrb[0].mxu0
        %v972 = vadd.f32 0.0, %v971
        %v973 = vpop.f32.mrb[0].mxu0
        %v974 = vpop.f32.mrb[0].mxu0
        %v975 = vadd.f32 0.0, %v974
        %v976 = vpop.f32.mrb[0].mxu0
        %977 = vmatprep.mubr.bf16.mxu0 0
        %978 = vmatmul.mubr.bf16.gmra.mrb[0].mxu0 %v916
        %v979 = vpop.f32.mrb[0].mxu0
        %v980 = vadd.f32 0.0, %v979
        %v981 = vpop.f32.mrb[0].mxu0
        %v982 = vpop.f32.mrb[0].mxu0
        %v983 = vadd.f32 0.0, %v982
        %v984 = vpop.f32.mrb[0].mxu0
        %985 = vmatprep.mubr.bf16.mxu0 0
        %986 = vmatmul.mubr.bf16.gmra.mrb[0].mxu0 %v917
        %v987 = vpop.f32.mrb[0].mxu0
        %v988 = vadd.f32 0.0, %v987
        %v989 = vpop.f32.mrb[0].mxu0
        %v990 = vpop.f32.mrb[0].mxu0
        %v991 = vadd.f32 0.0, %v990
        %v992 = vpop.f32.mrb[0].mxu0
        %993 = vmatprep.mubr.bf16.mxu0 0
        %994 = vmatmul.mubr.bf16.gmra.mrb[0].mxu0 %v918
        %v995 = vpop.f32.mrb[0].mxu0
        %v996 = vadd.f32 0.0, %v995
        %v997 = vpop.f32.mrb[0].mxu0
        %v998 = vpop.f32.mrb[0].mxu0
        %v999 = vadd.f32 0.0, %v998
        %v1000 = vpop.f32.mrb[0].mxu0
        %1001 = vmatprep.mubr.bf16.mxu0 0
        %1002 = vmatmul.mubr.bf16.gmra.mrb[0].mxu0 %v919
        %v1003 = vpop.f32.mrb[0].mxu0
        %v1004 = vadd.f32 0.0, %v1003
        %v1005 = vpop.f32.mrb[0].mxu0
        %v1006 = vpop.f32.mrb[0].mxu0
        %v1007 = vadd.f32 0.0, %v1006
        %v1008 = vpop.f32.mrb[0].mxu0
        %1009 = vmatprep.mubr.bf16.mxu0 0
        %1010 = vmatmul.mubr.bf16.gmra.mrb[0].mxu0 %v920
        %v1011 = vpop.f32.mrb[0].mxu0
        %v1012 = vadd.f32 0.0, %v1011
        %v1013 = vpop.f32.mrb[0].mxu0
        %v1014 = vpop.f32.mrb[0].mxu0
        %v1015 = vadd.f32 0.0, %v1014
        %v1016 = vpop.f32.mrb[0].mxu0
        %1017 = vdwg.mxu0
        %v1018 = vld [vmem:[#allocation4] sm:$0xff]
        %v1019 = vld [vmem:[#allocation4 + $0x8] sm:$0xff]
        %v1020 = vld [vmem:[#allocation4 + $0x10] sm:$0xff]
        %v1021 = vld [vmem:[#allocation4 + $0x18] sm:$0xff]
        %v1022 = vld [vmem:[#allocation4 + $0x20] sm:$0xff]
        %v1023 = vld [vmem:[#allocation4 + $0x28] sm:$0xff]
        %v1024 = vld [vmem:[#allocation4 + $0x30] sm:$0xff]
        %v1025 = vld [vmem:[#allocation4 + $0x38] sm:$0xff]
        %v1026 = vld [vmem:[#allocation4 + $0x40] sm:$0xff]
        %v1027 = vld [vmem:[#allocation4 + $0x48] sm:$0xff]
        %v1028 = vld [vmem:[#allocation4 + $0x50] sm:$0xff]
        %v1029 = vld [vmem:[#allocation4 + $0x58] sm:$0xff]
        %v1030 = vld [vmem:[#allocation4 + $0x60] sm:$0xff]
        %v1031 = vld [vmem:[#allocation4 + $0x68] sm:$0xff]
        %v1032 = vld [vmem:[#allocation4 + $0x70] sm:$0xff]
        %v1033 = vld [vmem:[#allocation4 + $0x78] sm:$0xff]
        %1035 = vset.pattern.permute.xlu0 0
        %1036 = vperm.xlu0 %1035, %v754
        %v1037 = vpop.permute.xlu0 %1036
        %1040 = vset.pattern.permute.xlu0 0
        %1041 = vperm.xlu0 %1040, %v756
        %v1042 = vpop.permute.xlu0 %1041
        %1045 = vset.pattern.permute.xlu0 0
        %1046 = vperm.xlu0 %1045, %v758
        %v1047 = vpop.permute.xlu0 %1046
        %1050 = vset.pattern.permute.xlu0 0
        %1051 = vperm.xlu0 %1050, %v760
        %v1052 = vpop.permute.xlu0 %1051
        %1055 = vset.pattern.permute.xlu0 0
        %1056 = vperm.xlu0 %1055, %v762
        %v1057 = vpop.permute.xlu0 %1056
        %1060 = vset.pattern.permute.xlu0 0
        %1061 = vperm.xlu0 %1060, %v764
        %v1062 = vpop.permute.xlu0 %1061
        %1065 = vset.pattern.permute.xlu0 0
        %1066 = vperm.xlu0 %1065, %v766
        %v1067 = vpop.permute.xlu0 %1066
        %1070 = vset.pattern.permute.xlu0 0
        %1071 = vperm.xlu0 %1070, %v768
        %v1072 = vpop.permute.xlu0 %1071
        %1075 = vset.pattern.permute.xlu0 0
        %1076 = vperm.xlu0 %1075, %v770
        %v1077 = vpop.permute.xlu0 %1076
        %1080 = vset.pattern.permute.xlu0 0
        %1081 = vperm.xlu0 %1080, %v772
        %v1082 = vpop.permute.xlu0 %1081
        %1085 = vset.pattern.permute.xlu0 0
        %1086 = vperm.xlu0 %1085, %v774
        %v1087 = vpop.permute.xlu0 %1086
        %1090 = vset.pattern.permute.xlu0 0
        %1091 = vperm.xlu0 %1090, %v776
        %v1092 = vpop.permute.xlu0 %1091
        %1095 = vset.pattern.permute.xlu0 0
        %1096 = vperm.xlu0 %1095, %v778
        %v1097 = vpop.permute.xlu0 %1096
        %1100 = vset.pattern.permute.xlu0 0
        %1101 = vperm.xlu0 %1100, %v780
        %v1102 = vpop.permute.xlu0 %1101
        %1105 = vset.pattern.permute.xlu0 0
        %1106 = vperm.xlu0 %1105, %v782
        %v1107 = vpop.permute.xlu0 %1106
        %1110 = vset.pattern.permute.xlu0 0
        %1111 = vperm.xlu0 %1110, %v784
        %v1112 = vpop.permute.xlu0 %1111
        %v1114 = vmul.f32 %v1037, %v1018
        %v1115 = vmul.f32 %v1042, %v1019
        %v1116 = vmul.f32 %v1047, %v1020
        %v1117 = vmul.f32 %v1052, %v1021
        %v1118 = vmul.f32 %v1057, %v1022
        %v1119 = vmul.f32 %v1062, %v1023
        %v1120 = vmul.f32 %v1067, %v1024
        %v1121 = vmul.f32 %v1072, %v1025
        %v1122 = vmul.f32 %v1077, %v1026
        %v1123 = vmul.f32 %v1082, %v1027
        %v1124 = vmul.f32 %v1087, %v1028
        %v1125 = vmul.f32 %v1092, %v1029
        %v1126 = vmul.f32 %v1097, %v1030
        %v1127 = vmul.f32 %v1102, %v1031
        %v1128 = vmul.f32 %v1107, %v1032
        %v1129 = vmul.f32 %v1112, %v1033
        %v1130 = vadd.f32 %v1114, %v956
        %v1131 = vadd.f32 %v1115, %v959
        %v1132 = vadd.f32 %v1116, %v964
        %v1133 = vadd.f32 %v1117, %v967
        %v1134 = vadd.f32 %v1118, %v972
        %v1135 = vadd.f32 %v1119, %v975
        %v1136 = vadd.f32 %v1120, %v980
        %v1137 = vadd.f32 %v1121, %v983
        %v1138 = vadd.f32 %v1122, %v988
        %v1139 = vadd.f32 %v1123, %v991
        %v1140 = vadd.f32 %v1124, %v996
        %v1141 = vadd.f32 %v1125, %v999
        %v1142 = vadd.f32 %v1126, %v1004
        %v1143 = vadd.f32 %v1127, %v1007
        %v1144 = vadd.f32 %v1128, %v1012
        %v1145 = vadd.f32 %v1129, %v1015
        %vm1146 = vcmask 72704
        %1147 = vst.msk [vmem:[#allocation4] sm:$0xff] %vm1146, %v1130
        %1148 = vst.msk [vmem:[#allocation4 + $0x8] sm:$0xff] %vm1146, %v1131
        %1149 = vst.msk [vmem:[#allocation4 + $0x10] sm:$0xff] %vm1146, %v1132
        %1150 = vst.msk [vmem:[#allocation4 + $0x18] sm:$0xff] %vm1146, %v1133
        %1151 = vst.msk [vmem:[#allocation4 + $0x20] sm:$0xff] %vm1146, %v1134
        %1152 = vst.msk [vmem:[#allocation4 + $0x28] sm:$0xff] %vm1146, %v1135
        %1153 = vst.msk [vmem:[#allocation4 + $0x30] sm:$0xff] %vm1146, %v1136
        %1154 = vst.msk [vmem:[#allocation4 + $0x38] sm:$0xff] %vm1146, %v1137
        %1155 = vst.msk [vmem:[#allocation4 + $0x40] sm:$0xff] %vm1146, %v1138
        %1156 = vst.msk [vmem:[#allocation4 + $0x48] sm:$0xff] %vm1146, %v1139
        %1157 = vst.msk [vmem:[#allocation4 + $0x50] sm:$0xff] %vm1146, %v1140
        %1158 = vst.msk [vmem:[#allocation4 + $0x58] sm:$0xff] %vm1146, %v1141
        %1159 = vst.msk [vmem:[#allocation4 + $0x60] sm:$0xff] %vm1146, %v1142
        %1160 = vst.msk [vmem:[#allocation4 + $0x68] sm:$0xff] %vm1146, %v1143
        %1161 = vst.msk [vmem:[#allocation4 + $0x70] sm:$0xff] %vm1146, %v1144
        %1162 = vst.msk [vmem:[#allocation4 + $0x78] sm:$0xff] %vm1146, %v1145
        %vm1163 = vcmask 7168
        %1164 = vst.msk [vmem:[#allocation3] sm:$0xff] %vm1163, %v721
        %1165 = vst.msk [vmem:[#allocation3 + $0x8] sm:$0xff] %vm1163, %v722
        %1166 = vst.msk [vmem:[#allocation3 + $0x10] sm:$0xff] %vm1163, %v723
        %1167 = vst.msk [vmem:[#allocation3 + $0x18] sm:$0xff] %vm1163, %v724
        %1168 = vst.msk [vmem:[#allocation3 + $0x20] sm:$0xff] %vm1163, %v725
        %1169 = vst.msk [vmem:[#allocation3 + $0x28] sm:$0xff] %vm1163, %v726
        %1170 = vst.msk [vmem:[#allocation3 + $0x30] sm:$0xff] %vm1163, %v727
        %1171 = vst.msk [vmem:[#allocation3 + $0x38] sm:$0xff] %vm1163, %v728
        %1172 = vst.msk [vmem:[#allocation3 + $0x40] sm:$0xff] %vm1163, %v729
        %1173 = vst.msk [vmem:[#allocation3 + $0x48] sm:$0xff] %vm1163, %v730
        %1174 = vst.msk [vmem:[#allocation3 + $0x50] sm:$0xff] %vm1163, %v731
        %1175 = vst.msk [vmem:[#allocation3 + $0x58] sm:$0xff] %vm1163, %v732
        %1176 = vst.msk [vmem:[#allocation3 + $0x60] sm:$0xff] %vm1163, %v733
        %1177 = vst.msk [vmem:[#allocation3 + $0x68] sm:$0xff] %vm1163, %v734
        %1178 = vst.msk [vmem:[#allocation3 + $0x70] sm:$0xff] %vm1163, %v735
        %1179 = vst.msk [vmem:[#allocation3 + $0x78] sm:$0xff] %vm1163, %v736
        %p1180 = scmp.eq.s32.totalorder %s27, 1
        // Predicated region
        $region49: #{tpu_custom_call.1} parent=43 // pred_check
          %p1181 = pneg %p1180
        $region50: #{tpu_custom_call.1} parent=43 // pred_check_branch
          %1183 = sbr.rel (%p1181) target = $region52
        $region51: #{tpu_custom_call.1} parent=43 // pred_region
          %v1184 = vld [vmem:[#allocation4] sm:$0xff]
          %v1185 = vld [vmem:[#allocation4 + $0x8] sm:$0xff]
          %v1186 = vld [vmem:[#allocation4 + $0x10] sm:$0xff]
          %v1187 = vld [vmem:[#allocation4 + $0x18] sm:$0xff]
          %v1188 = vld [vmem:[#allocation4 + $0x20] sm:$0xff]
          %v1189 = vld [vmem:[#allocation4 + $0x28] sm:$0xff]
          %v1190 = vld [vmem:[#allocation4 + $0x30] sm:$0xff]
          %v1191 = vld [vmem:[#allocation4 + $0x38] sm:$0xff]
          %v1192 = vld [vmem:[#allocation4 + $0x40] sm:$0xff]
          %v1193 = vld [vmem:[#allocation4 + $0x48] sm:$0xff]
          %v1194 = vld [vmem:[#allocation4 + $0x50] sm:$0xff]
          %v1195 = vld [vmem:[#allocation4 + $0x58] sm:$0xff]
          %v1196 = vld [vmem:[#allocation4 + $0x60] sm:$0xff]
          %v1197 = vld [vmem:[#allocation4 + $0x68] sm:$0xff]
          %v1198 = vld [vmem:[#allocation4 + $0x70] sm:$0xff]
          %v1199 = vld [vmem:[#allocation4 + $0x78] sm:$0xff]
          %v1200 = vrcp.pop %v1184
          %v1201 = vrcp.pop %v1185
          %v1202 = vrcp.pop %v1186
          %v1203 = vrcp.pop %v1187
          %v1204 = vrcp.pop %v1188
          %v1205 = vrcp.pop %v1189
          %v1206 = vrcp.pop %v1190
          %v1207 = vrcp.pop %v1191
          %v1208 = vrcp.pop %v1192
          %v1209 = vrcp.pop %v1193
          %v1210 = vrcp.pop %v1194
          %v1211 = vrcp.pop %v1195
          %v1212 = vrcp.pop %v1196
          %v1213 = vrcp.pop %v1197
          %v1214 = vrcp.pop %v1198
          %v1215 = vrcp.pop %v1199
          %1217 = vset.pattern.permute.xlu0 8
          %1218 = vperm.xlu0 %1217, %v1200
          %v1219 = vpop.permute.xlu0 %1218
          %1222 = vset.pattern.permute.xlu0 8
          %1223 = vperm.xlu0 %1222, %v1201
          %v1224 = vpop.permute.xlu0 %1223
          %1227 = vset.pattern.permute.xlu0 8
          %1228 = vperm.xlu0 %1227, %v1202
          %v1229 = vpop.permute.xlu0 %1228
          %1232 = vset.pattern.permute.xlu0 8
          %1233 = vperm.xlu0 %1232, %v1203
          %v1234 = vpop.permute.xlu0 %1233
          %1237 = vset.pattern.permute.xlu0 8
          %1238 = vperm.xlu0 %1237, %v1204
          %v1239 = vpop.permute.xlu0 %1238
          %1242 = vset.pattern.permute.xlu0 8
          %1243 = vperm.xlu0 %1242, %v1205
          %v1244 = vpop.permute.xlu0 %1243
          %1247 = vset.pattern.permute.xlu0 8
          %1248 = vperm.xlu0 %1247, %v1206
          %v1249 = vpop.permute.xlu0 %1248
          %1252 = vset.pattern.permute.xlu0 8
          %1253 = vperm.xlu0 %1252, %v1207
          %v1254 = vpop.permute.xlu0 %1253
          %1257 = vset.pattern.permute.xlu0 8
          %1258 = vperm.xlu0 %1257, %v1208
          %v1259 = vpop.permute.xlu0 %1258
          %1262 = vset.pattern.permute.xlu0 8
          %1263 = vperm.xlu0 %1262, %v1209
          %v1264 = vpop.permute.xlu0 %1263
          %1267 = vset.pattern.permute.xlu0 8
          %1268 = vperm.xlu0 %1267, %v1210
          %v1269 = vpop.permute.xlu0 %1268
          %1272 = vset.pattern.permute.xlu0 8
          %1273 = vperm.xlu0 %1272, %v1211
          %v1274 = vpop.permute.xlu0 %1273
          %1277 = vset.pattern.permute.xlu0 8
          %1278 = vperm.xlu0 %1277, %v1212
          %v1279 = vpop.permute.xlu0 %1278
          %1282 = vset.pattern.permute.xlu0 8
          %1283 = vperm.xlu0 %1282, %v1213
          %v1284 = vpop.permute.xlu0 %1283
          %1287 = vset.pattern.permute.xlu0 8
          %1288 = vperm.xlu0 %1287, %v1214
          %v1289 = vpop.permute.xlu0 %1288
          %1292 = vset.pattern.permute.xlu0 8
          %1293 = vperm.xlu0 %1292, %v1215
          %v1294 = vpop.permute.xlu0 %1293
          %v1296 = vmul.f32 %v1184, %v1219
          %v1297 = vmul.f32 %v1185, %v1224
          %v1298 = vmul.f32 %v1186, %v1229
          %v1299 = vmul.f32 %v1187, %v1234
          %v1300 = vmul.f32 %v1188, %v1239
          %v1301 = vmul.f32 %v1189, %v1244
          %v1302 = vmul.f32 %v1190, %v1249
          %v1303 = vmul.f32 %v1191, %v1254
          %v1304 = vmul.f32 %v1192, %v1259
          %v1305 = vmul.f32 %v1193, %v1264
          %v1306 = vmul.f32 %v1194, %v1269
          %v1307 = vmul.f32 %v1195, %v1274
          %v1308 = vmul.f32 %v1196, %v1279
          %v1309 = vmul.f32 %v1197, %v1284
          %v1310 = vmul.f32 %v1198, %v1289
          %v1311 = vmul.f32 %v1199, %v1294
          %v1312 = vpack.c.bf16 %v1297, %v1296
          %v1313 = vpack.c.bf16 %v1299, %v1298
          %v1314 = vpack.c.bf16 %v1301, %v1300
          %v1315 = vpack.c.bf16 %v1303, %v1302
          %v1316 = vpack.c.bf16 %v1305, %v1304
          %v1317 = vpack.c.bf16 %v1307, %v1306
          %v1318 = vpack.c.bf16 %v1309, %v1308
          %v1319 = vpack.c.bf16 %v1311, %v1310
          %v1320 = vld [vmem:[%s4] sm:$0xf]
          %v1321 = vld [vmem:[%s5] sm:$0xff]
          %1323 = vset.pattern.permute.xlu0 0
          %1324 = vperm.xlu0 %1323, %v1321
          %v1325 = vpop.permute.xlu0 %1324
          %v1328 = vsel %vm470, %v1320, 0
          %v1331 = vsel %vm470, %v1312, 0
          %v1334 = vsel %vm470, %v1313, 0
          %v1337 = vsel %vm470, %v1314, 0
          %v1340 = vsel %vm470, %v1315, 0
          %v1343 = vsel %vm470, %v1316, 0
          %v1346 = vsel %vm470, %v1317, 0
          %v1349 = vsel %vm470, %v1318, 0
          %v1352 = vsel %vm470, %v1319, 0
          %1354 = vmatprep.subr.bf16.mxu0 0
          %1355 = vmatpush1.bf16.xpose.msra.mxu0 %v1331
          %1356 = vmatprep.subr.bf16.mxu0 0
          %1357 = vmatpush1.bf16.xpose.msra.mxu0 %v1334
          %1358 = vmatprep.subr.bf16.mxu0 0
          %1359 = vmatpush1.bf16.xpose.msra.mxu0 %v1337
          %1360 = vmatprep.subr.bf16.mxu0 0
          %1361 = vmatpush1.bf16.xpose.msra.mxu0 %v1340
          %1362 = vmatprep.subr.bf16.mxu0 0
          %1363 = vmatpush1.bf16.xpose.msra.mxu0 %v1343
          %1364 = vmatprep.subr.bf16.mxu0 0
          %1365 = vmatpush1.bf16.xpose.msra.mxu0 %v1346
          %1366 = vmatprep.subr.bf16.mxu0 0
          %1367 = vmatpush1.bf16.xpose.msra.mxu0 %v1349
          %1368 = vmatprep.subr.bf16.mxu0 0
          %1369 = vmatpush1.bf16.xpose.msra.mxu0 %v1352
          %1370 = vmatprep.subr.bf16.mxu0 0
          %1371 = vmatpush1.bf16.xpose.msra.mxu0 0
          %1372 = vmatprep.subr.bf16.mxu0 0
          %1373 = vmatpush1.bf16.xpose.msra.mxu0 0
          %1374 = vmatprep.subr.bf16.mxu0 0
          %1375 = vmatpush1.bf16.xpose.msra.mxu0 0
          %1376 = vmatprep.subr.bf16.mxu0 0
          %1377 = vmatpush1.bf16.xpose.msra.mxu0 0
          %1378 = vmatprep.subr.bf16.mxu0 0
          %1379 = vmatpush1.bf16.xpose.msra.mxu0 0
          %1380 = vmatprep.subr.bf16.mxu0 0
          %1381 = vmatpush1.bf16.xpose.msra.mxu0 0
          %1382 = vmatprep.subr.bf16.mxu0 0
          %1383 = vmatpush1.bf16.xpose.msra.mxu0 0
          %1384 = vmatprep.subr.bf16.mxu0 0
          %1385 = vmatpush1.bf16.xpose.msra.mxu0 0
          %1386 = vmatprep.mubr.bf16.mxu0 0
          %1387 = vmatmul.mubr.bf16.gmra.mrb[0].mxu0 %v1328
          %v1388 = vpop.f32.mrb[0].mxu0
          %v1389 = vadd.f32 %v1325, %v1388
          %v1390 = vpop.f32.mrb[0].mxu0
          %v1391 = vpop.f32.mrb[0].mxu0
          %v1392 = vpop.f32.mrb[0].mxu0
          %1393 = vdwg.mxu0
          %v1394 = vmax.f32 %v1389, 0.0
          %1395 = vst [vmem:[%s296] sm:$0xff] %v1394
        $region52: #{tpu_custom_call.1} parent=43 // pred_fallthru
          _
        %s1396 = sand.u32 %s189, 1
        %s1397 = scalar_lea.sflag [#allocation6], %s1396
        %s1398 = sand.u32 %s189, 1
        %s1399 = smul.addr %s1398, 8
        %s1400 = scalar_lea.vmem [#allocation5], %s1399
        // Predicated region
        $region53: #{tpu_custom_call.1} parent=43 // pred_check
          %p1401 = pneg %p199
        $region54: #{tpu_custom_call.1} parent=43 // pred_check_branch
          %1403 = sbr.rel (%p1401) target = $region56
        $region55: #{tpu_custom_call.1} parent=43 // pred_region
          %s1405 = ssub.s32 128, 128
          %1406 = vsyncadd %s1397, %s1405
          %s1407 = smul.addr %s25, 2
          %s1408 = sadd.s32 %s26, %s1407
          %s1409 = smul.addr %s1408, 128
          %s1410 = scalar_lea.hbm %s6, %s1409
          %s1412 = sshll.u32 %s1400, 4
          %s1413 = int_to_ptr.vmem [resolvable:$true] %s1412
          %1415 = dma.vmem_to_hbm [thread:$0]  %s1413, 128, %s1410, %s1397
        $region56: #{tpu_custom_call.1} parent=43 // pred_fallthru
          _
      $region44: #{tpu_custom_call.1} parent=5 // pred_fallthru
        _
      %p1416 = scmp.le.s32.totalorder 2, %s15
      // Predicated region
      $region57: #{tpu_custom_call.1} parent=5 // pred_check
        %p1417 = pneg %p1416
      $region58: #{tpu_custom_call.1} parent=5 // pred_check_branch
        %1419 = sbr.rel (%p1417) target = $region60
      $region59: #{tpu_custom_call.1} parent=5 // pred_region
        %s1420 = ssub.s32 %s15, 2
        // Predicated region
        $region61: #{tpu_custom_call.1} parent=59 // pred_check
          %p1421 = pneg %p205
        $region62: #{tpu_custom_call.1} parent=59 // pred_check_branch
          %1423 = sbr.rel (%p1421) target = $region64
        $region63: #{tpu_custom_call.1} parent=59 // pred_region
          %s1424 = sand.u32 %s190, 1
          %s1425 = scalar_lea.sflag [#allocation6], %s1424
          %s1426 = sand.u32 %s190, 1
          %s1427 = smul.addr %s1426, 8
          %s1428 = scalar_lea.vmem [#allocation5], %s1427
          %1429 = dma.done %s1425, 128
        $region64: #{tpu_custom_call.1} parent=59 // pred_fallthru
          _
      $region60: #{tpu_custom_call.1} parent=5 // pred_fallthru
        _
    $region6: #{tpu_custom_call.1} parent=1 // loop_footer
      %s19 = sadd.s32 1, %s15
    $region7: #{tpu_custom_call.1} parent=1 // loop_footer_branch
      %14 = sbr.rel target = $region3
    $region8: #{tpu_custom_call.1} parent=1 // loop_exit
      _
    %1430 = vsyncpa [#allocation6], 1
    %s1431 = scalar_lea.sflag [#allocation6], 1
    %1432 = vsyncpa %s1431, 1

</llo_original>
